<compile_context>
chip_gen: v7x
topology: tpu7x:2x2x1
jax: 0.10.0
libtpu: 0.0.40
codegen_flags: <defaults>
</compile_context>

<pallas_src>
import numpy as np
import jax
import jax.numpy as jnp
from jax.experimental import pallas as pl
from jax.experimental.pallas import tpu as pltpu


def _round_up(a, m):
    return ((a + m - 1) // m) * m


def _gelu(x, approximate):
    """GELU in f32. approximate=False matches nn.GELU() (erf) to ~1.5e-7."""
    if approximate:
        c = 0.7978845608028654  # sqrt(2/pi)
        return 0.5 * x * (1.0 + jnp.tanh(c * (x + 0.044715 * x * x * x)))
    # erf via Abramowitz-Stegun 7.1.26 (only exp/mul/add/div/select -> safe Mosaic lowering).
    z = x * 0.7071067811865476
    s = jnp.where(z >= 0.0, 1.0, -1.0)
    a = jnp.abs(z)
    t = 1.0 / (1.0 + 0.3275911 * a)
    poly = t * (0.254829592 + t * (-0.284496736 + t * (1.421413741
                + t * (-1.453152027 + t * 1.061405429))))
    erf = s * (1.0 - poly * jnp.exp(-(a * a)))
    return 0.5 * x * (1.0 + erf)


# ----------------------------------------------------------------------------
# Fused kernel: all FAN layers + final Linear for one batch tile.
# ----------------------------------------------------------------------------
def _make_fused_kernel(num_hidden_layers, d_p, d_p_bar, matmul_dtype, gelu_approximate):
    n = num_hidden_layers
    f32_mm = np.dtype(matmul_dtype) == np.dtype(np.float32)
    precision = jax.lax.Precision.HIGHEST if f32_mm else None

    def kernel(x_ref, *refs):
        # refs = [Wcat_0, B_0, ..., Wcat_{n-1}, B_{n-1}, out_w, out_b, out_ref]
        layer_refs = refs[: 2 * n]
        out_w_ref = refs[2 * n]
        out_b_ref = refs[2 * n + 1]
        out_ref = refs[2 * n + 2]

        x = x_ref[...]                                    # (Bt, Fin) f32, stays in registers
        for l in range(n):
            w_ref = layer_refs[2 * l]                     # (Fin_l, d_p + d_p_bar)
            b_ref = layer_refs[2 * l + 1]                 # (1, d_p_bar)
            # Single fused MXU matmul per layer: [p | q] = x @ [Wp | Wp_bar].
            h = jnp.dot(x.astype(matmul_dtype), w_ref[...],
                        preferred_element_type=jnp.float32, precision=precision)
            p = h[:, :d_p]
            q = h[:, d_p:] + b_ref[...]
            # Gates are folded into the NEXT matmul's weights in the wrapper, so the
            # branches need no scaling here. Next-layer input is built in registers
            # (no VMEM scratch round trip, no masked partial stores).
            x = jnp.concatenate(
                [jnp.cos(p), jnp.sin(p), _gelu(q, gelu_approximate)], axis=-1)

        # Epilogue: nn.Linear(fin, 1) as a VPU multiply + lane reduction, emitted
        # lane-major (1, 1, Bt) so the HBM writeback is a dense unmasked store.
        acc = jnp.sum(x * out_w_ref[...], axis=-1, keepdims=True) + out_b_ref[...]
        out_ref[...] = acc.reshape(out_ref.shape)

    return kernel


# ----------------------------------------------------------------------------
# Builder (one pallas_call for the whole stack)
# ----------------------------------------------------------------------------
def _build_and_run(x_pad, params, *, block_b, num_tiles, matmul_dtype,
                   gelu_approximate, single_buffer_weights):
    B_pad, in_features = x_pad.shape
    layers = params["layers"]
    n = len(layers)
    if n:
        d_p = layers[0]["Wp"].shape[1]
        d_p_bar = layers[0]["Wp_bar"].shape[1]
        out_dim = 2 * d_p + d_p_bar
    else:
        d_p = d_p_bar = 0
        out_dim = in_features

    def const_spec(shape):
        idx = lambda i, _nd=len(shape): (0,) * _nd
        if single_buffer_weights:
            # Constant-index resident blocks: single buffer halves weight VMEM (v7x: 64 MiB).
            return pl.BlockSpec(shape, idx, pipeline_mode=pl.Buffered(1))
        return pl.BlockSpec(shape, idx)

    kernel_inputs = [x_pad]
    in_specs = [pl.BlockSpec((block_b, in_features), lambda i: (i, 0))]

    flops = 0
    transcendentals = 0
    weight_bytes = 0
    fin = in_features
    feature_scale = None  # per-feature gate scale, folded into the next matmul's weights
    for lp in layers:
        w_cat = jnp.concatenate(
            [jnp.asarray(lp["Wp"], jnp.float32), jnp.asarray(lp["Wp_bar"], jnp.float32)],
            axis=1)
        if feature_scale is not None:
            # Mathematically identical to gating the previous layer's activations:
            #   (s * y) @ W == y @ (diag(s) @ W)
            w_cat = feature_scale[:, None] * w_cat
        w_cat = w_cat.astype(matmul_dtype)
        bias = jnp.asarray(lp["Bp_bar"], jnp.float32).reshape(1, d_p_bar)
        g = jax.nn.sigmoid(jnp.asarray(lp["gate"], jnp.float32).reshape(()))
        feature_scale = jnp.concatenate(
            [jnp.full((2 * d_p,), 1.0, jnp.float32) * g,
             jnp.full((d_p_bar,), 1.0, jnp.float32) * (1.0 - g)])

        kernel_inputs += [w_cat, bias]
        in_specs += [const_spec((fin, d_p + d_p_bar)), const_spec((1, d_p_bar))]
        flops += 2 * B_pad * fin * (d_p + d_p_bar)
        transcendentals += B_pad * (2 * d_p + d_p_bar)      # cos + sin + exp(erf poly)
        weight_bytes += int(w_cat.size) * w_cat.dtype.itemsize + int(bias.size) * 4
        fin = out_dim
    # TODO(synk): for production sizes, pad fin/(d_p+d_p_bar) to MXU-native multiples
    # (128 on v5e, 256 on v6e/v7x) instead of running ragged K/N.

    out_w = jnp.asarray(params["out_w"], jnp.float32).reshape(-1)
    if feature_scale is not None:
        out_w = out_w * feature_scale                        # fold last layer's gate too
    out_w = out_w.reshape(1, fin)
    out_b = jnp.asarray(params["out_b"], jnp.float32).reshape(1, 1)
    kernel_inputs += [out_w, out_b]
    in_specs += [const_spec((1, fin)), const_spec((1, 1))]
    flops += 2 * B_pad * fin
    weight_bytes += (fin + 1) * 4

    # Scoped-VMEM limit from the actual resident footprint (+ headroom).
    wbuf = 1 if single_buffer_weights else 2
    resident = (wbuf * weight_bytes
                + 2 * block_b * in_features * 4              # double-buffered x tile
                + 2 * block_b * 4)                           # double-buffered out tile
    vmem_limit = int(min(96 * 2**20, max(32 * 2**20, 2 * resident)))

    bytes_accessed = int(x_pad.size) * 4 + weight_bytes + num_tiles * block_b * 4

    kernel = _make_fused_kernel(n, d_p, d_p_bar, matmul_dtype, gelu_approximate)

    return pl.pallas_call(
        kernel,
        out_shape=jax.ShapeDtypeStruct((num_tiles, 1, block_b), jnp.float32),
        grid_spec=pltpu.PrefetchScalarGridSpec(
            num_scalar_prefetch=0,
            grid=(num_tiles,),
            in_specs=in_specs,
            out_specs=pl.BlockSpec((1, 1, block_b), lambda i: (i, 0, 0)),
        ),
        compiler_params=pltpu.CompilerParams(
            dimension_semantics=("parallel",),
            vmem_limit_bytes=vmem_limit,
        ),
        cost_estimate=pl.CostEstimate(
            flops=int(flops),
            transcendentals=int(transcendentals),
            bytes_accessed=int(bytes_accessed),
        ),
    )(*kernel_inputs)


# ----------------------------------------------------------------------------
# Public wrapper
# ----------------------------------------------------------------------------
def fan_gated_forward(x, params, *, block_b=None, matmul_dtype=jnp.bfloat16,
                      gelu_approximate=False):
    x = jnp.asarray(x, jnp.float32)
    B, _ = x.shape

    # --- batch tiling: big tiles (weights are resident), pad B instead of collapsing grid,
    #     and keep >= 2 grid steps when possible so v7x can use both TensorCores.
    B8 = _round_up(B, 8)
    if block_b is None:
        block_b = min(256, B8)
    block_b = _round_up(max(8, min(block_b, B8)), 8)
    if B8 // block_b < 2 and B8 >= 16:
        block_b = _round_up(-(-B8 // 2), 8)
    num_tiles = -(-B8 // block_b)
    B_pad = num_tiles * block_b
    x_pad = jnp.pad(x, ((0, B_pad - B), (0, 0))) if B_pad != B else x

    common = dict(block_b=block_b, num_tiles=num_tiles, matmul_dtype=matmul_dtype,
                  gelu_approximate=gelu_approximate)
    try:
        out = _build_and_run(x_pad, params, single_buffer_weights=True, **common)
    except Exception:
        # TODO(synk): this jax version rejected pl.Buffered(1) single-buffering of the
        # resident weights; fall back to default double buffering (correct, 2x weight VMEM).
        out = _build_and_run(x_pad, params, single_buffer_weights=False, **common)

    return out.reshape(B_pad, 1)[:B]


# ----------------------------------------------------------------------------
# Deterministic parameter construction (mirrors FANGated.__init__ shapes)
# ----------------------------------------------------------------------------
def init_params(key, in_features, hidden_dim, num_layers):
    d_p = hidden_dim // 4
    d_p_bar = hidden_dim
    layers = []
    fin = in_features
    for _ in range(num_layers - 1):
        key, k1, k2, k3 = jax.random.split(key, 4)
        scale = 1.0 / (fin ** 0.5)   # keep pre-activations O(1)
        layers.append(dict(
            Wp=scale * jax.random.normal(k1, (fin, d_p), jnp.float32),
            Wp_bar=scale * jax.random.normal(k2, (fin, d_p_bar), jnp.float32),
            Bp_bar=jnp.zeros((d_p_bar,), jnp.float32),
            gate=jax.random.normal(k3, (1,), jnp.float32),
        ))
        fin = 2 * d_p + d_p_bar
    key, k4, k5 = jax.random.split(key, 3)
    # nn.Linear(fin, 1): weight stored transposed as [fin, 1]
    out_w = jax.random.normal(k4, (fin, 1), jnp.float32) / (fin ** 0.5)
    out_b = 0.01 * jax.random.normal(k5, (1,), jnp.float32)
    return dict(layers=layers, out_w=out_w, out_b=out_b)


# Pure-JAX reference (f32, HIGHEST precision, exact erf GELU) — module semantics.
def _ref_forward(x, params):
    hp = jax.lax.Precision.HIGHEST
    for lp in params["layers"]:
        p = jnp.dot(x, lp["Wp"], precision=hp)
        q = jnp.dot(x, lp["Wp_bar"], precision=hp) + lp["Bp_bar"]
        g = jax.nn.sigmoid(lp["gate"][0])
        x = jnp.concatenate(
            [g * jnp.cos(p), g * jnp.sin(p),
             (1.0 - g) * jax.nn.gelu(q, approximate=False)], axis=-1)
    return jnp.dot(x, params["out_w"], precision=hp) + params["out_b"]


if __name__ == "__main__":
    batch = 16
    in_features = 16
    hidden_dim = 32
    num_layers = 3

    key = jax.random.PRNGKey(0)
    kx, kp = jax.random.split(key)
    x = jax.random.normal(kx, (batch, in_features), jnp.float32)
    params = init_params(kp, in_features, hidden_dim, num_layers)

    out = fan_gated_forward(x, params)            # default: bf16 matmul operands, f32 accum
    out = jax.block_until_ready(out)

    ref = _ref_forward(x, params)
    assert out.shape == (batch, 1), out.shape
    assert jnp.allclose(out, ref, atol=2e-2, rtol=2e-2), (
        float(jnp.max(jnp.abs(out - ref))), out, ref)

    print("KERNEL_OK")
</pallas_src>

<mosaic_0001>
module attributes {stable_mosaic.version = 11 : i64} {
  func.func @kernel(%arg0: i32, %arg1: memref<8x16xf32, #tpu.memory_space<vmem>>, %arg2: memref<16x40xbf16, #tpu.memory_space<vmem>>, %arg3: memref<1x32xf32, #tpu.memory_space<vmem>>, %arg4: memref<48x40xbf16, #tpu.memory_space<vmem>>, %arg5: memref<1x32xf32, #tpu.memory_space<vmem>>, %arg6: memref<1x48xf32, #tpu.memory_space<vmem>>, %arg7: memref<1x1xf32, #tpu.memory_space<vmem>>, %arg8: memref<1x1x8xf32, #tpu.memory_space<vmem>>) attributes {dimension_semantics = [#tpu.dimension_semantics<parallel>], iteration_bounds = array<i64: 2>, scalar_prefetch = 0 : i64, scratch_operands = 0 : i64, tpu.core_type = #tpu.core_type<tc>, window_params = [{transform_indices = @transform_0, window_bounds = array<i64: 8, 16>}, {pipeline_mode = #tpu.pipeline_mode<synchronous>, transform_indices = @transform_1, window_bounds = array<i64: 16, 40>}, {pipeline_mode = #tpu.pipeline_mode<synchronous>, transform_indices = @transform_2, window_bounds = array<i64: 1, 32>}, {pipeline_mode = #tpu.pipeline_mode<synchronous>, transform_indices = @transform_3, window_bounds = array<i64: 48, 40>}, {pipeline_mode = #tpu.pipeline_mode<synchronous>, transform_indices = @transform_4, window_bounds = array<i64: 1, 32>}, {pipeline_mode = #tpu.pipeline_mode<synchronous>, transform_indices = @transform_5, window_bounds = array<i64: 1, 48>}, {pipeline_mode = #tpu.pipeline_mode<synchronous>, transform_indices = @transform_6, window_bounds = array<i64: 1, 1>}, {transform_indices = @transform_7, window_bounds = array<i64: 1, 1, 8>}]} {
    %c0 = arith.constant 0 : index
    %c0_0 = arith.constant 0 : index
    %0 = vector.load %arg1[%c0, %c0_0] : memref<8x16xf32, #tpu.memory_space<vmem>>, vector<8x16xf32>
    %1 = arith.truncf %0 : vector<8x16xf32> to vector<8x16xbf16>
    %c0_1 = arith.constant 0 : index
    %c0_2 = arith.constant 0 : index
    %2 = vector.load %arg2[%c0_1, %c0_2] : memref<16x40xbf16, #tpu.memory_space<vmem>>, vector<16x40xbf16>
    %cst = arith.constant dense<0.000000e+00> : vector<8x40xf32>
    %3 = tpu.matmul %1, %2, %cst {dimension_numbers = #tpu.dot_dimension_numbers<[1], [0], [0], [1], [0, 0, 1, 1], [], []>} : vector<8x16xbf16>, vector<16x40xbf16>, vector<8x40xf32> -> vector<8x40xf32>
    %4 = vector.extract_strided_slice %3 {offsets = [0, 0], sizes = [8, 8], strides = [1, 1]} : vector<8x40xf32> to vector<8x8xf32>
    %5 = vector.extract_strided_slice %3 {offsets = [0, 8], sizes = [8, 32], strides = [1, 1]} : vector<8x40xf32> to vector<8x32xf32>
    %c0_3 = arith.constant 0 : index
    %c0_4 = arith.constant 0 : index
    %6 = vector.load %arg3[%c0_3, %c0_4] : memref<1x32xf32, #tpu.memory_space<vmem>>, vector<1x32xf32>
    %7 = vector.broadcast %6 : vector<1x32xf32> to vector<8x32xf32>
    %8 = arith.addf %5, %7 : vector<8x32xf32>
    %9 = math.cos %4 : vector<8x8xf32>
    %10 = math.sin %4 : vector<8x8xf32>
    %cst_5 = arith.constant 0.707106769 : f32
    %11 = vector.broadcast %cst_5 : f32 to vector<8x32xf32>
    %12 = arith.mulf %8, %11 : vector<8x32xf32>
    %cst_6 = arith.constant 0.000000e+00 : f32
    %13 = vector.broadcast %cst_6 : f32 to vector<8x32xf32>
    %14 = arith.cmpf oge, %12, %13 : vector<8x32xf32>
    %cst_7 = arith.constant 1.000000e+00 : f32
    %cst_8 = arith.constant -1.000000e+00 : f32
    %15 = vector.broadcast %cst_7 : f32 to vector<8x32xf32>
    %16 = vector.broadcast %cst_8 : f32 to vector<8x32xf32>
    %17 = arith.select %14, %15, %16 : vector<8x32xi1>, vector<8x32xf32>
    %18 = math.absf %12 : vector<8x32xf32>
    %cst_9 = arith.constant 0.327591091 : f32
    %19 = vector.broadcast %cst_9 : f32 to vector<8x32xf32>
    %20 = arith.mulf %19, %18 : vector<8x32xf32>
    %cst_10 = arith.constant 1.000000e+00 : f32
    %21 = vector.broadcast %cst_10 : f32 to vector<8x32xf32>
    %22 = arith.addf %21, %20 : vector<8x32xf32>
    %cst_11 = arith.constant 1.000000e+00 : f32
    %23 = vector.broadcast %cst_11 : f32 to vector<8x32xf32>
    %24 = arith.divf %23, %22 : vector<8x32xf32>
    %cst_12 = arith.constant 1.06140542 : f32
    %25 = vector.broadcast %cst_12 : f32 to vector<8x32xf32>
    %26 = arith.mulf %24, %25 : vector<8x32xf32>
    %cst_13 = arith.constant -1.45315206 : f32
    %27 = vector.broadcast %cst_13 : f32 to vector<8x32xf32>
    %28 = arith.addf %27, %26 : vector<8x32xf32>
    %29 = arith.mulf %24, %28 : vector<8x32xf32>
    %cst_14 = arith.constant 1.42141378 : f32
    %30 = vector.broadcast %cst_14 : f32 to vector<8x32xf32>
    %31 = arith.addf %30, %29 : vector<8x32xf32>
    %32 = arith.mulf %24, %31 : vector<8x32xf32>
    %cst_15 = arith.constant -0.284496725 : f32
    %33 = vector.broadcast %cst_15 : f32 to vector<8x32xf32>
    %34 = arith.addf %33, %32 : vector<8x32xf32>
    %35 = arith.mulf %24, %34 : vector<8x32xf32>
    %cst_16 = arith.constant 0.254829586 : f32
    %36 = vector.broadcast %cst_16 : f32 to vector<8x32xf32>
    %37 = arith.addf %36, %35 : vector<8x32xf32>
    %38 = arith.mulf %24, %37 : vector<8x32xf32>
    %39 = arith.mulf %18, %18 : vector<8x32xf32>
    %cst_17 = arith.constant 0.000000e+00 : f32
    %40 = vector.broadcast %cst_17 : f32 to vector<8x32xf32>
    %41 = arith.subf %40, %39 : vector<8x32xf32>
    %42 = math.exp %41 : vector<8x32xf32>
    %43 = arith.mulf %38, %42 : vector<8x32xf32>
    %cst_18 = arith.constant 1.000000e+00 : f32
    %44 = vector.broadcast %cst_18 : f32 to vector<8x32xf32>
    %45 = arith.subf %44, %43 : vector<8x32xf32>
    %46 = arith.mulf %17, %45 : vector<8x32xf32>
    %cst_19 = arith.constant 5.000000e-01 : f32
    %47 = vector.broadcast %cst_19 : f32 to vector<8x32xf32>
    %48 = arith.mulf %47, %8 : vector<8x32xf32>
    %cst_20 = arith.constant 1.000000e+00 : f32
    %49 = vector.broadcast %cst_20 : f32 to vector<8x32xf32>
    %50 = arith.addf %49, %46 : vector<8x32xf32>
    %51 = arith.mulf %48, %50 : vector<8x32xf32>
    %52 = tpu.concatenate %9, %10, %51 in 1 : vector<8x8xf32>, vector<8x8xf32>, vector<8x32xf32> -> vector<8x48xf32>
    %53 = arith.truncf %52 : vector<8x48xf32> to vector<8x48xbf16>
    %c0_21 = arith.constant 0 : index
    %c0_22 = arith.constant 0 : index
    %54 = vector.load %arg4[%c0_21, %c0_22] : memref<48x40xbf16, #tpu.memory_space<vmem>>, vector<48x40xbf16>
    %cst_23 = arith.constant dense<0.000000e+00> : vector<8x40xf32>
    %55 = tpu.matmul %53, %54, %cst_23 {dimension_numbers = #tpu.dot_dimension_numbers<[1], [0], [0], [1], [0, 0, 1, 1], [], []>} : vector<8x48xbf16>, vector<48x40xbf16>, vector<8x40xf32> -> vector<8x40xf32>
    %56 = vector.extract_strided_slice %55 {offsets = [0, 0], sizes = [8, 8], strides = [1, 1]} : vector<8x40xf32> to vector<8x8xf32>
    %57 = vector.extract_strided_slice %55 {offsets = [0, 8], sizes = [8, 32], strides = [1, 1]} : vector<8x40xf32> to vector<8x32xf32>
    %c0_24 = arith.constant 0 : index
    %c0_25 = arith.constant 0 : index
    %58 = vector.load %arg5[%c0_24, %c0_25] : memref<1x32xf32, #tpu.memory_space<vmem>>, vector<1x32xf32>
    %59 = vector.broadcast %58 : vector<1x32xf32> to vector<8x32xf32>
    %60 = arith.addf %57, %59 : vector<8x32xf32>
    %61 = math.cos %56 : vector<8x8xf32>
    %62 = math.sin %56 : vector<8x8xf32>
    %cst_26 = arith.constant 0.707106769 : f32
    %63 = vector.broadcast %cst_26 : f32 to vector<8x32xf32>
    %64 = arith.mulf %60, %63 : vector<8x32xf32>
    %cst_27 = arith.constant 0.000000e+00 : f32
    %65 = vector.broadcast %cst_27 : f32 to vector<8x32xf32>
    %66 = arith.cmpf oge, %64, %65 : vector<8x32xf32>
    %cst_28 = arith.constant 1.000000e+00 : f32
    %cst_29 = arith.constant -1.000000e+00 : f32
    %67 = vector.broadcast %cst_28 : f32 to vector<8x32xf32>
    %68 = vector.broadcast %cst_29 : f32 to vector<8x32xf32>
    %69 = arith.select %66, %67, %68 : vector<8x32xi1>, vector<8x32xf32>
    %70 = math.absf %64 : vector<8x32xf32>
    %cst_30 = arith.constant 0.327591091 : f32
    %71 = vector.broadcast %cst_30 : f32 to vector<8x32xf32>
    %72 = arith.mulf %71, %70 : vector<8x32xf32>
    %cst_31 = arith.constant 1.000000e+00 : f32
    %73 = vector.broadcast %cst_31 : f32 to vector<8x32xf32>
    %74 = arith.addf %73, %72 : vector<8x32xf32>
    %cst_32 = arith.constant 1.000000e+00 : f32
    %75 = vector.broadcast %cst_32 : f32 to vector<8x32xf32>
    %76 = arith.divf %75, %74 : vector<8x32xf32>
    %cst_33 = arith.constant 1.06140542 : f32
    %77 = vector.broadcast %cst_33 : f32 to vector<8x32xf32>
    %78 = arith.mulf %76, %77 : vector<8x32xf32>
    %cst_34 = arith.constant -1.45315206 : f32
    %79 = vector.broadcast %cst_34 : f32 to vector<8x32xf32>
    %80 = arith.addf %79, %78 : vector<8x32xf32>
    %81 = arith.mulf %76, %80 : vector<8x32xf32>
    %cst_35 = arith.constant 1.42141378 : f32
    %82 = vector.broadcast %cst_35 : f32 to vector<8x32xf32>
    %83 = arith.addf %82, %81 : vector<8x32xf32>
    %84 = arith.mulf %76, %83 : vector<8x32xf32>
    %cst_36 = arith.constant -0.284496725 : f32
    %85 = vector.broadcast %cst_36 : f32 to vector<8x32xf32>
    %86 = arith.addf %85, %84 : vector<8x32xf32>
    %87 = arith.mulf %76, %86 : vector<8x32xf32>
    %cst_37 = arith.constant 0.254829586 : f32
    %88 = vector.broadcast %cst_37 : f32 to vector<8x32xf32>
    %89 = arith.addf %88, %87 : vector<8x32xf32>
    %90 = arith.mulf %76, %89 : vector<8x32xf32>
    %91 = arith.mulf %70, %70 : vector<8x32xf32>
    %cst_38 = arith.constant 0.000000e+00 : f32
    %92 = vector.broadcast %cst_38 : f32 to vector<8x32xf32>
    %93 = arith.subf %92, %91 : vector<8x32xf32>
    %94 = math.exp %93 : vector<8x32xf32>
    %95 = arith.mulf %90, %94 : vector<8x32xf32>
    %cst_39 = arith.constant 1.000000e+00 : f32
    %96 = vector.broadcast %cst_39 : f32 to vector<8x32xf32>
    %97 = arith.subf %96, %95 : vector<8x32xf32>
    %98 = arith.mulf %69, %97 : vector<8x32xf32>
    %cst_40 = arith.constant 5.000000e-01 : f32
    %99 = vector.broadcast %cst_40 : f32 to vector<8x32xf32>
    %100 = arith.mulf %99, %60 : vector<8x32xf32>
    %cst_41 = arith.constant 1.000000e+00 : f32
    %101 = vector.broadcast %cst_41 : f32 to vector<8x32xf32>
    %102 = arith.addf %101, %98 : vector<8x32xf32>
    %103 = arith.mulf %100, %102 : vector<8x32xf32>
    %104 = tpu.concatenate %61, %62, %103 in 1 : vector<8x8xf32>, vector<8x8xf32>, vector<8x32xf32> -> vector<8x48xf32>
    %c0_42 = arith.constant 0 : index
    %c0_43 = arith.constant 0 : index
    %105 = vector.load %arg6[%c0_42, %c0_43] : memref<1x48xf32, #tpu.memory_space<vmem>>, vector<1x48xf32>
    %106 = vector.broadcast %105 : vector<1x48xf32> to vector<8x48xf32>
    %107 = arith.mulf %104, %106 : vector<8x48xf32>
    %cst_44 = arith.constant dense<0.000000e+00> : vector<8xf32>
    %108 = vector.multi_reduction <add>, %107, %cst_44 [1] : vector<8x48xf32> to vector<8xf32>
    %109 = vector.shape_cast %108 : vector<8xf32> to vector<8x1xf32>
    %c0_45 = arith.constant 0 : index
    %c0_46 = arith.constant 0 : index
    %110 = vector.load %arg7[%c0_45, %c0_46] : memref<1x1xf32, #tpu.memory_space<vmem>>, vector<1x1xf32>
    %111 = vector.broadcast %110 : vector<1x1xf32> to vector<8x1xf32>
    %112 = arith.addf %109, %111 : vector<8x1xf32>
    %113 = vector.shape_cast %112 : vector<8x1xf32> to vector<1x1x8xf32>
    %c0_47 = arith.constant 0 : index
    %c0_48 = arith.constant 0 : index
    %c0_49 = arith.constant 0 : index
    %114 = vector.load %arg8[%c0_47, %c0_48, %c0_49] : memref<1x1x8xf32, #tpu.memory_space<vmem>>, vector<1x1x8xf32>
    tpu.vector_store %arg8[%c0_47, %c0_48, %c0_49], %113 {strides = array<i32>} : memref<1x1x8xf32, #tpu.memory_space<vmem>>, vector<1x1x8xf32>,
    return
  }
  func.func @transform_0(%arg0: i32) -> (i32, i32) {
    %c0_i32 = arith.constant 0 : i32
    %c0_i32_0 = arith.constant 0 : i32
    return %arg0, %c0_i32 : i32, i32
  }
  func.func @transform_1(%arg0: i32) -> (i32, i32) {
    %c0_i32 = arith.constant 0 : i32
    %c0_i32_0 = arith.constant 0 : i32
    %c0_i32_1 = arith.constant 0 : i32
    return %c0_i32, %c0_i32_0 : i32, i32
  }
  func.func @transform_2(%arg0: i32) -> (i32, i32) {
    %c0_i32 = arith.constant 0 : i32
    %c0_i32_0 = arith.constant 0 : i32
    %c0_i32_1 = arith.constant 0 : i32
    return %c0_i32, %c0_i32_0 : i32, i32
  }
  func.func @transform_3(%arg0: i32) -> (i32, i32) {
    %c0_i32 = arith.constant 0 : i32
    %c0_i32_0 = arith.constant 0 : i32
    %c0_i32_1 = arith.constant 0 : i32
    return %c0_i32, %c0_i32_0 : i32, i32
  }
  func.func @transform_4(%arg0: i32) -> (i32, i32) {
    %c0_i32 = arith.constant 0 : i32
    %c0_i32_0 = arith.constant 0 : i32
    %c0_i32_1 = arith.constant 0 : i32
    return %c0_i32, %c0_i32_0 : i32, i32
  }
  func.func @transform_5(%arg0: i32) -> (i32, i32) {
    %c0_i32 = arith.constant 0 : i32
    %c0_i32_0 = arith.constant 0 : i32
    %c0_i32_1 = arith.constant 0 : i32
    return %c0_i32, %c0_i32_0 : i32, i32
  }
  func.func @transform_6(%arg0: i32) -> (i32, i32) {
    %c0_i32 = arith.constant 0 : i32
    %c0_i32_0 = arith.constant 0 : i32
    %c0_i32_1 = arith.constant 0 : i32
    return %c0_i32, %c0_i32_0 : i32, i32
  }
  func.func @transform_7(%arg0: i32) -> (i32, i32, i32) {
    %c0_i32 = arith.constant 0 : i32
    %c0_i32_0 = arith.constant 0 : i32
    %c0_i32_1 = arith.constant 0 : i32
    return %arg0, %c0_i32, %c0_i32_0 : i32, i32, i32
  }
}

module attributes {stable_mosaic.version = 11 : i64} {
  func.func @kernel(%arg0: i32, %arg1: memref<8x16xf32, #tpu.memory_space<vmem>>, %arg2: memref<16x40xbf16, #tpu.memory_space<vmem>>, %arg3: memref<1x32xf32, #tpu.memory_space<vmem>>, %arg4: memref<48x40xbf16, #tpu.memory_space<vmem>>, %arg5: memref<1x32xf32, #tpu.memory_space<vmem>>, %arg6: memref<1x48xf32, #tpu.memory_space<vmem>>, %arg7: memref<1x1xf32, #tpu.memory_space<vmem>>, %arg8: memref<1x1x8xf32, #tpu.memory_space<vmem>>) attributes {dimension_semantics = [#tpu.dimension_semantics<parallel>], iteration_bounds = array<i64: 2>, scalar_prefetch = 0 : i64, scratch_operands = 0 : i64, tpu.core_type = #tpu.core_type<tc>, window_params = [{transform_indices = @transform_0, window_bounds = array<i64: 8, 16>}, {pipeline_mode = #tpu.pipeline_mode<synchronous>, transform_indices = @transform_1, window_bounds = array<i64: 16, 40>}, {pipeline_mode = #tpu.pipeline_mode<synchronous>, transform_indices = @transform_2, window_bounds = array<i64: 1, 32>}, {pipeline_mode = #tpu.pipeline_mode<synchronous>, transform_indices = @transform_3, window_bounds = array<i64: 48, 40>}, {pipeline_mode = #tpu.pipeline_mode<synchronous>, transform_indices = @transform_4, window_bounds = array<i64: 1, 32>}, {pipeline_mode = #tpu.pipeline_mode<synchronous>, transform_indices = @transform_5, window_bounds = array<i64: 1, 48>}, {pipeline_mode = #tpu.pipeline_mode<synchronous>, transform_indices = @transform_6, window_bounds = array<i64: 1, 1>}, {transform_indices = @transform_7, window_bounds = array<i64: 1, 1, 8>}]} {
    %c0 = arith.constant 0 : index
    %c0_0 = arith.constant 0 : index
    %0 = vector.load %arg1[%c0, %c0_0] : memref<8x16xf32, #tpu.memory_space<vmem>>, vector<8x16xf32>
    %1 = arith.truncf %0 : vector<8x16xf32> to vector<8x16xbf16>
    %c0_1 = arith.constant 0 : index
    %c0_2 = arith.constant 0 : index
    %2 = vector.load %arg2[%c0_1, %c0_2] : memref<16x40xbf16, #tpu.memory_space<vmem>>, vector<16x40xbf16>
    %cst = arith.constant dense<0.000000e+00> : vector<8x40xf32>
    %3 = tpu.matmul %1, %2, %cst {dimension_numbers = #tpu.dot_dimension_numbers<[1], [0], [0], [1], [0, 0, 1, 1], [], []>} : vector<8x16xbf16>, vector<16x40xbf16>, vector<8x40xf32> -> vector<8x40xf32>
    %4 = vector.extract_strided_slice %3 {offsets = [0, 0], sizes = [8, 8], strides = [1, 1]} : vector<8x40xf32> to vector<8x8xf32>
    %5 = vector.extract_strided_slice %3 {offsets = [0, 8], sizes = [8, 32], strides = [1, 1]} : vector<8x40xf32> to vector<8x32xf32>
    %c0_3 = arith.constant 0 : index
    %c0_4 = arith.constant 0 : index
    %6 = vector.load %arg3[%c0_3, %c0_4] : memref<1x32xf32, #tpu.memory_space<vmem>>, vector<1x32xf32>
    %7 = vector.broadcast %6 : vector<1x32xf32> to vector<8x32xf32>
    %8 = arith.addf %5, %7 : vector<8x32xf32>
    %9 = math.cos %4 : vector<8x8xf32>
    %10 = math.sin %4 : vector<8x8xf32>
    %cst_5 = arith.constant 0.707106769 : f32
    %11 = vector.broadcast %cst_5 : f32 to vector<8x32xf32>
    %12 = arith.mulf %8, %11 : vector<8x32xf32>
    %cst_6 = arith.constant 0.000000e+00 : f32
    %13 = vector.broadcast %cst_6 : f32 to vector<8x32xf32>
    %14 = arith.cmpf oge, %12, %13 : vector<8x32xf32>
    %cst_7 = arith.constant 1.000000e+00 : f32
    %cst_8 = arith.constant -1.000000e+00 : f32
    %15 = vector.broadcast %cst_7 : f32 to vector<8x32xf32>
    %16 = vector.broadcast %cst_8 : f32 to vector<8x32xf32>
    %17 = arith.select %14, %15, %16 : vector<8x32xi1>, vector<8x32xf32>
    %18 = math.absf %12 : vector<8x32xf32>
    %cst_9 = arith.constant 0.327591091 : f32
    %19 = vector.broadcast %cst_9 : f32 to vector<8x32xf32>
    %20 = arith.mulf %19, %18 : vector<8x32xf32>
    %cst_10 = arith.constant 1.000000e+00 : f32
    %21 = vector.broadcast %cst_10 : f32 to vector<8x32xf32>
    %22 = arith.addf %21, %20 : vector<8x32xf32>
    %cst_11 = arith.constant 1.000000e+00 : f32
    %23 = vector.broadcast %cst_11 : f32 to vector<8x32xf32>
    %24 = arith.divf %23, %22 : vector<8x32xf32>
    %cst_12 = arith.constant 1.06140542 : f32
    %25 = vector.broadcast %cst_12 : f32 to vector<8x32xf32>
    %26 = arith.mulf %24, %25 : vector<8x32xf32>
    %cst_13 = arith.constant -1.45315206 : f32
    %27 = vector.broadcast %cst_13 : f32 to vector<8x32xf32>
    %28 = arith.addf %27, %26 : vector<8x32xf32>
    %29 = arith.mulf %24, %28 : vector<8x32xf32>
    %cst_14 = arith.constant 1.42141378 : f32
    %30 = vector.broadcast %cst_14 : f32 to vector<8x32xf32>
    %31 = arith.addf %30, %29 : vector<8x32xf32>
    %32 = arith.mulf %24, %31 : vector<8x32xf32>
    %cst_15 = arith.constant -0.284496725 : f32
    %33 = vector.broadcast %cst_15 : f32 to vector<8x32xf32>
    %34 = arith.addf %33, %32 : vector<8x32xf32>
    %35 = arith.mulf %24, %34 : vector<8x32xf32>
    %cst_16 = arith.constant 0.254829586 : f32
    %36 = vector.broadcast %cst_16 : f32 to vector<8x32xf32>
    %37 = arith.addf %36, %35 : vector<8x32xf32>
    %38 = arith.mulf %24, %37 : vector<8x32xf32>
    %39 = arith.mulf %18, %18 : vector<8x32xf32>
    %cst_17 = arith.constant 0.000000e+00 : f32
    %40 = vector.broadcast %cst_17 : f32 to vector<8x32xf32>
    %41 = arith.subf %40, %39 : vector<8x32xf32>
    %42 = math.exp %41 : vector<8x32xf32>
    %43 = arith.mulf %38, %42 : vector<8x32xf32>
    %cst_18 = arith.constant 1.000000e+00 : f32
    %44 = vector.broadcast %cst_18 : f32 to vector<8x32xf32>
    %45 = arith.subf %44, %43 : vector<8x32xf32>
    %46 = arith.mulf %17, %45 : vector<8x32xf32>
    %cst_19 = arith.constant 5.000000e-01 : f32
    %47 = vector.broadcast %cst_19 : f32 to vector<8x32xf32>
    %48 = arith.mulf %47, %8 : vector<8x32xf32>
    %cst_20 = arith.constant 1.000000e+00 : f32
    %49 = vector.broadcast %cst_20 : f32 to vector<8x32xf32>
    %50 = arith.addf %49, %46 : vector<8x32xf32>
    %51 = arith.mulf %48, %50 : vector<8x32xf32>
    %52 = tpu.concatenate %9, %10, %51 in 1 : vector<8x8xf32>, vector<8x8xf32>, vector<8x32xf32> -> vector<8x48xf32>
    %53 = arith.truncf %52 : vector<8x48xf32> to vector<8x48xbf16>
    %c0_21 = arith.constant 0 : index
    %c0_22 = arith.constant 0 : index
    %54 = vector.load %arg4[%c0_21, %c0_22] : memref<48x40xbf16, #tpu.memory_space<vmem>>, vector<48x40xbf16>
    %cst_23 = arith.constant dense<0.000000e+00> : vector<8x40xf32>
    %55 = tpu.matmul %53, %54, %cst_23 {dimension_numbers = #tpu.dot_dimension_numbers<[1], [0], [0], [1], [0, 0, 1, 1], [], []>} : vector<8x48xbf16>, vector<48x40xbf16>, vector<8x40xf32> -> vector<8x40xf32>
    %56 = vector.extract_strided_slice %55 {offsets = [0, 0], sizes = [8, 8], strides = [1, 1]} : vector<8x40xf32> to vector<8x8xf32>
    %57 = vector.extract_strided_slice %55 {offsets = [0, 8], sizes = [8, 32], strides = [1, 1]} : vector<8x40xf32> to vector<8x32xf32>
    %c0_24 = arith.constant 0 : index
    %c0_25 = arith.constant 0 : index
    %58 = vector.load %arg5[%c0_24, %c0_25] : memref<1x32xf32, #tpu.memory_space<vmem>>, vector<1x32xf32>
    %59 = vector.broadcast %58 : vector<1x32xf32> to vector<8x32xf32>
    %60 = arith.addf %57, %59 : vector<8x32xf32>
    %61 = math.cos %56 : vector<8x8xf32>
    %62 = math.sin %56 : vector<8x8xf32>
    %cst_26 = arith.constant 0.707106769 : f32
    %63 = vector.broadcast %cst_26 : f32 to vector<8x32xf32>
    %64 = arith.mulf %60, %63 : vector<8x32xf32>
    %cst_27 = arith.constant 0.000000e+00 : f32
    %65 = vector.broadcast %cst_27 : f32 to vector<8x32xf32>
    %66 = arith.cmpf oge, %64, %65 : vector<8x32xf32>
    %cst_28 = arith.constant 1.000000e+00 : f32
    %cst_29 = arith.constant -1.000000e+00 : f32
    %67 = vector.broadcast %cst_28 : f32 to vector<8x32xf32>
    %68 = vector.broadcast %cst_29 : f32 to vector<8x32xf32>
    %69 = arith.select %66, %67, %68 : vector<8x32xi1>, vector<8x32xf32>
    %70 = math.absf %64 : vector<8x32xf32>
    %cst_30 = arith.constant 0.327591091 : f32
    %71 = vector.broadcast %cst_30 : f32 to vector<8x32xf32>
    %72 = arith.mulf %71, %70 : vector<8x32xf32>
    %cst_31 = arith.constant 1.000000e+00 : f32
    %73 = vector.broadcast %cst_31 : f32 to vector<8x32xf32>
    %74 = arith.addf %73, %72 : vector<8x32xf32>
    %cst_32 = arith.constant 1.000000e+00 : f32
    %75 = vector.broadcast %cst_32 : f32 to vector<8x32xf32>
    %76 = arith.divf %75, %74 : vector<8x32xf32>
    %cst_33 = arith.constant 1.06140542 : f32
    %77 = vector.broadcast %cst_33 : f32 to vector<8x32xf32>
    %78 = arith.mulf %76, %77 : vector<8x32xf32>
    %cst_34 = arith.constant -1.45315206 : f32
    %79 = vector.broadcast %cst_34 : f32 to vector<8x32xf32>
    %80 = arith.addf %79, %78 : vector<8x32xf32>
    %81 = arith.mulf %76, %80 : vector<8x32xf32>
    %cst_35 = arith.constant 1.42141378 : f32
    %82 = vector.broadcast %cst_35 : f32 to vector<8x32xf32>
    %83 = arith.addf %82, %81 : vector<8x32xf32>
    %84 = arith.mulf %76, %83 : vector<8x32xf32>
    %cst_36 = arith.constant -0.284496725 : f32
    %85 = vector.broadcast %cst_36 : f32 to vector<8x32xf32>
    %86 = arith.addf %85, %84 : vector<8x32xf32>
    %87 = arith.mulf %76, %86 : vector<8x32xf32>
    %cst_37 = arith.constant 0.254829586 : f32
    %88 = vector.broadcast %cst_37 : f32 to vector<8x32xf32>
    %89 = arith.addf %88, %87 : vector<8x32xf32>
    %90 = arith.mulf %76, %89 : vector<8x32xf32>
    %91 = arith.mulf %70, %70 : vector<8x32xf32>
    %cst_38 = arith.constant 0.000000e+00 : f32
    %92 = vector.broadcast %cst_38 : f32 to vector<8x32xf32>
    %93 = arith.subf %92, %91 : vector<8x32xf32>
    %94 = math.exp %93 : vector<8x32xf32>
    %95 = arith.mulf %90, %94 : vector<8x32xf32>
    %cst_39 = arith.constant 1.000000e+00 : f32
    %96 = vector.broadcast %cst_39 : f32 to vector<8x32xf32>
    %97 = arith.subf %96, %95 : vector<8x32xf32>
    %98 = arith.mulf %69, %97 : vector<8x32xf32>
    %cst_40 = arith.constant 5.000000e-01 : f32
    %99 = vector.broadcast %cst_40 : f32 to vector<8x32xf32>
    %100 = arith.mulf %99, %60 : vector<8x32xf32>
    %cst_41 = arith.constant 1.000000e+00 : f32
    %101 = vector.broadcast %cst_41 : f32 to vector<8x32xf32>
    %102 = arith.addf %101, %98 : vector<8x32xf32>
    %103 = arith.mulf %100, %102 : vector<8x32xf32>
    %104 = tpu.concatenate %61, %62, %103 in 1 : vector<8x8xf32>, vector<8x8xf32>, vector<8x32xf32> -> vector<8x48xf32>
    %c0_42 = arith.constant 0 : index
    %c0_43 = arith.constant 0 : index
    %105 = vector.load %arg6[%c0_42, %c0_43] : memref<1x48xf32, #tpu.memory_space<vmem>>, vector<1x48xf32>
    %106 = vector.broadcast %105 : vector<1x48xf32> to vector<8x48xf32>
    %107 = arith.mulf %104, %106 : vector<8x48xf32>
    %cst_44 = arith.constant dense<0.000000e+00> : vector<8xf32>
    %108 = vector.multi_reduction <add>, %107, %cst_44 [1] : vector<8x48xf32> to vector<8xf32>
    %109 = vector.shape_cast %108 : vector<8xf32> to vector<8x1xf32>
    %c0_45 = arith.constant 0 : index
    %c0_46 = arith.constant 0 : index
    %110 = vector.load %arg7[%c0_45, %c0_46] : memref<1x1xf32, #tpu.memory_space<vmem>>, vector<1x1xf32>
    %111 = vector.broadcast %110 : vector<1x1xf32> to vector<8x1xf32>
    %112 = arith.addf %109, %111 : vector<8x1xf32>
    %113 = vector.shape_cast %112 : vector<8x1xf32> to vector<1x1x8xf32>
    %c0_47 = arith.constant 0 : index
    %c0_48 = arith.constant 0 : index
    %c0_49 = arith.constant 0 : index
    %114 = vector.load %arg8[%c0_47, %c0_48, %c0_49] : memref<1x1x8xf32, #tpu.memory_space<vmem>>, vector<1x1x8xf32>
    tpu.vector_store %arg8[%c0_47, %c0_48, %c0_49], %113 {strides = array<i32>} : memref<1x1x8xf32, #tpu.memory_space<vmem>>, vector<1x1x8xf32>,
    return
  }
  func.func @transform_0(%arg0: i32) -> (i32, i32) {
    %c0_i32 = arith.constant 0 : i32
    %c0_i32_0 = arith.constant 0 : i32
    return %arg0, %c0_i32 : i32, i32
  }
  func.func @transform_1(%arg0: i32) -> (i32, i32) {
    %c0_i32 = arith.constant 0 : i32
    %c0_i32_0 = arith.constant 0 : i32
    %c0_i32_1 = arith.constant 0 : i32
    return %c0_i32, %c0_i32_0 : i32, i32
  }
  func.func @transform_2(%arg0: i32) -> (i32, i32) {
    %c0_i32 = arith.constant 0 : i32
    %c0_i32_0 = arith.constant 0 : i32
    %c0_i32_1 = arith.constant 0 : i32
    return %c0_i32, %c0_i32_0 : i32, i32
  }
  func.func @transform_3(%arg0: i32) -> (i32, i32) {
    %c0_i32 = arith.constant 0 : i32
    %c0_i32_0 = arith.constant 0 : i32
    %c0_i32_1 = arith.constant 0 : i32
    return %c0_i32, %c0_i32_0 : i32, i32
  }
  func.func @transform_4(%arg0: i32) -> (i32, i32) {
    %c0_i32 = arith.constant 0 : i32
    %c0_i32_0 = arith.constant 0 : i32
    %c0_i32_1 = arith.constant 0 : i32
    return %c0_i32, %c0_i32_0 : i32, i32
  }
  func.func @transform_5(%arg0: i32) -> (i32, i32) {
    %c0_i32 = arith.constant 0 : i32
    %c0_i32_0 = arith.constant 0 : i32
    %c0_i32_1 = arith.constant 0 : i32
    return %c0_i32, %c0_i32_0 : i32, i32
  }
  func.func @transform_6(%arg0: i32) -> (i32, i32) {
    %c0_i32 = arith.constant 0 : i32
    %c0_i32_0 = arith.constant 0 : i32
    %c0_i32_1 = arith.constant 0 : i32
    return %c0_i32, %c0_i32_0 : i32, i32
  }
  func.func @transform_7(%arg0: i32) -> (i32, i32, i32) {
    %c0_i32 = arith.constant 0 : i32
    %c0_i32_0 = arith.constant 0 : i32
    %c0_i32_1 = arith.constant 0 : i32
    return %arg0, %c0_i32, %c0_i32_0 : i32, i32, i32
  }
}

</mosaic_0001>

<llo_original>
// kernel: tpu_custom_call.1
$region0: #{tpu_custom_call.1}
  #allocation0 [shape = 'u32[]', space=smem, size = 0x4, offset = 0x4, fixed_abs, tag = 'smem constant byte address 0x4 - core index']
  #allocation1 [shape = 'u32[144,128]{1,0:T(1,128)}', space=vmem, size = 0x12000, scoped, tag = 'internal scratch']
  #allocation2 [shape = 'f32[1,1]{1,0:T(1,128)S(1)}', space=vmem, size = 0x200, scoped, tag = 'scoped memory for tpu_custom_call.1']
  %s0 = inlined_call_operand.vmem [shape: f32[16,16], index: 0, kind: input, shape index: {}]
  %s1 = inlined_call_operand.vmem [shape: bf16[16,40], index: 1, kind: input, shape index: {}]
  %s2 = inlined_call_operand.vmem [shape: f32[1,32], index: 2, kind: input, shape index: {}]
  %s3 = inlined_call_operand.vmem [shape: bf16[48,40], index: 3, kind: input, shape index: {}]
  %s4 = inlined_call_operand.vmem [shape: f32[1,32], index: 4, kind: input, shape index: {}]
  %s5 = inlined_call_operand.vmem [shape: f32[1,48], index: 5, kind: input, shape index: {}]
  %s6 = inlined_call_operand.<no memory space> [shape: f32[1,1], index: 6, kind: input, shape index: {}]
  %s7 = inlined_call_operand.hbm [shape: f32[2,1,8], index: 7, kind: output, shape index: {}]
  %s8 = sld [smem:[#allocation0]]
  $region61: #{tpu_custom_call.1} parent=0
    _
  %s10 = ssub.s32 1, %s8
  %s11 = scalar_select 0, %s10, %s8
  %v12 = vstv %s6
  %13 = vst [vmem:[#allocation2] sm:$0x1] %v12
  $region1: #{tpu_custom_call.1} parent=0
    #allocation3 [shape = 'u8[1024]{0}', space=vmem, size = 0x400, scoped, tag = 'output window, operand 0']
    #allocation4 [shape = 's32[2]{0}', space=sflag, size = 0x8, scoped, tag = 'scoped memory for tpu_custom_call.1']
    %14 = vsyncpa [#allocation4], 0
    %s15 = scalar_lea.sflag [#allocation4], 1
    %16 = vsyncpa %s15, 0
    loop: start=0, step=1, limit=4
    $region2: #{tpu_custom_call.1} parent=1 // loop_pre_header
      _
    $region3: #{tpu_custom_call.1} parent=1 // loop_header
      %s18 = sphi 0, %s22
      %p19 = scmp.ge.s32.totalorder %s18, 4
      %s28 = sphi 0, %s30
      %s31 = sphi 0, %s28
      %s32 = sphi 0, %s31
      %s48 = sphi 0, %s32
      %s52 = sphi 0, %s52
      %s54 = sphi 0, %s52
      %s55 = sphi 0, %s54
      %s69 = sphi 0, %s55
      %s73 = sphi 0, %s73
      %s75 = sphi 0, %s73
      %s76 = sphi 0, %s75
      %s90 = sphi 0, %s76
      %s94 = sphi 0, %s94
      %s96 = sphi 0, %s94
      %s97 = sphi 0, %s96
      %s111 = sphi 0, %s97
      %s115 = sphi 0, %s115
      %s117 = sphi 0, %s115
      %s118 = sphi 0, %s117
      %s132 = sphi 0, %s118
      %s136 = sphi 0, %s136
      %s138 = sphi 0, %s136
      %s139 = sphi 0, %s138
      %s153 = sphi 0, %s139
      %s157 = sphi 0, %s157
      %s159 = sphi 0, %s157
      %s160 = sphi 0, %s159
      %s174 = sphi 0, %s160
      %s180 = sphi 0, %s182
      %s183 = sphi 0, %s180
      %s184 = sphi 0, %s183
      %s200 = sphi 0, %s184
    $region4: #{tpu_custom_call.1} parent=1 // loop_header_branch
      %21 = sbr.rel (%p19) target = $region8
    $region5: #{tpu_custom_call.1} parent=1 // loop_body
      %s23 = ssub.s32 %s18, 1
      %s24 = ssub.s32 %s18, 2
      %s25 = sadd.s32 %s18, 1
      %s26 = ssub.s32 %s18, %s25
      %p27 = scmp.eq.s32.totalorder %s26, 0
      %s29 = sadd.s32 %s28, 1
      %s30 = scalar_select %p27, %s28, %s29
      %p33 = pneg %p27
      %p34 = scmp.eq.s32.totalorder %s18, 1
      %p35 = por %p33, %p34
      %p36 = scmp.ne.s32.totalorder %s28, %s31
      %p37 = scmp.eq.s32.totalorder %s18, 0
      %p38 = por %p36, %p37
      %p39 = scmp.ne.s32.totalorder %s28, %s31
      %p40 = scmp.eq.s32.totalorder %s23, 1
      %p41 = por %p39, %p40
      %p42 = scmp.ne.s32.totalorder %s31, %s32
      %p43 = scmp.eq.s32.totalorder %s23, 0
      %p44 = por %p42, %p43
      %p45 = scmp.ne.s32.totalorder %s31, %s32
      %p46 = scmp.eq.s32.totalorder %s24, 1
      %p47 = por %p45, %p46
      %p49 = scmp.ne.s32.totalorder %s32, %s48
      %p50 = scmp.eq.s32.totalorder %s24, 0
      %p51 = por %p49, %p50
      %s53 = sadd.s32 %s52, 1
      %p56 = scmp.eq.s32.totalorder %s18, 1
      %p57 = scmp.ne.s32.totalorder %s52, %s54
      %p58 = scmp.eq.s32.totalorder %s18, 0
      %p59 = por %p57, %p58
      %p60 = scmp.ne.s32.totalorder %s52, %s54
      %p61 = scmp.eq.s32.totalorder %s23, 1
      %p62 = por %p60, %p61
      %p63 = scmp.ne.s32.totalorder %s54, %s55
      %p64 = scmp.eq.s32.totalorder %s23, 0
      %p65 = por %p63, %p64
      %p66 = scmp.ne.s32.totalorder %s54, %s55
      %p67 = scmp.eq.s32.totalorder %s24, 1
      %p68 = por %p66, %p67
      %p70 = scmp.ne.s32.totalorder %s55, %s69
      %p71 = scmp.eq.s32.totalorder %s24, 0
      %p72 = por %p70, %p71
      %s74 = sadd.s32 %s73, 1
      %p77 = scmp.eq.s32.totalorder %s18, 1
      %p78 = scmp.ne.s32.totalorder %s73, %s75
      %p79 = scmp.eq.s32.totalorder %s18, 0
      %p80 = por %p78, %p79
      %p81 = scmp.ne.s32.totalorder %s73, %s75
      %p82 = scmp.eq.s32.totalorder %s23, 1
      %p83 = por %p81, %p82
      %p84 = scmp.ne.s32.totalorder %s75, %s76
      %p85 = scmp.eq.s32.totalorder %s23, 0
      %p86 = por %p84, %p85
      %p87 = scmp.ne.s32.totalorder %s75, %s76
      %p88 = scmp.eq.s32.totalorder %s24, 1
      %p89 = por %p87, %p88
      %p91 = scmp.ne.s32.totalorder %s76, %s90
      %p92 = scmp.eq.s32.totalorder %s24, 0
      %p93 = por %p91, %p92
      %s95 = sadd.s32 %s94, 1
      %p98 = scmp.eq.s32.totalorder %s18, 1
      %p99 = scmp.ne.s32.totalorder %s94, %s96
      %p100 = scmp.eq.s32.totalorder %s18, 0
      %p101 = por %p99, %p100
      %p102 = scmp.ne.s32.totalorder %s94, %s96
      %p103 = scmp.eq.s32.totalorder %s23, 1
      %p104 = por %p102, %p103
      %p105 = scmp.ne.s32.totalorder %s96, %s97
      %p106 = scmp.eq.s32.totalorder %s23, 0
      %p107 = por %p105, %p106
      %p108 = scmp.ne.s32.totalorder %s96, %s97
      %p109 = scmp.eq.s32.totalorder %s24, 1
      %p110 = por %p108, %p109
      %p112 = scmp.ne.s32.totalorder %s97, %s111
      %p113 = scmp.eq.s32.totalorder %s24, 0
      %p114 = por %p112, %p113
      %s116 = sadd.s32 %s115, 1
      %p119 = scmp.eq.s32.totalorder %s18, 1
      %p120 = scmp.ne.s32.totalorder %s115, %s117
      %p121 = scmp.eq.s32.totalorder %s18, 0
      %p122 = por %p120, %p121
      %p123 = scmp.ne.s32.totalorder %s115, %s117
      %p124 = scmp.eq.s32.totalorder %s23, 1
      %p125 = por %p123, %p124
      %p126 = scmp.ne.s32.totalorder %s117, %s118
      %p127 = scmp.eq.s32.totalorder %s23, 0
      %p128 = por %p126, %p127
      %p129 = scmp.ne.s32.totalorder %s117, %s118
      %p130 = scmp.eq.s32.totalorder %s24, 1
      %p131 = por %p129, %p130
      %p133 = scmp.ne.s32.totalorder %s118, %s132
      %p134 = scmp.eq.s32.totalorder %s24, 0
      %p135 = por %p133, %p134
      %s137 = sadd.s32 %s136, 1
      %p140 = scmp.eq.s32.totalorder %s18, 1
      %p141 = scmp.ne.s32.totalorder %s136, %s138
      %p142 = scmp.eq.s32.totalorder %s18, 0
      %p143 = por %p141, %p142
      %p144 = scmp.ne.s32.totalorder %s136, %s138
      %p145 = scmp.eq.s32.totalorder %s23, 1
      %p146 = por %p144, %p145
      %p147 = scmp.ne.s32.totalorder %s138, %s139
      %p148 = scmp.eq.s32.totalorder %s23, 0
      %p149 = por %p147, %p148
      %p150 = scmp.ne.s32.totalorder %s138, %s139
      %p151 = scmp.eq.s32.totalorder %s24, 1
      %p152 = por %p150, %p151
      %p154 = scmp.ne.s32.totalorder %s139, %s153
      %p155 = scmp.eq.s32.totalorder %s24, 0
      %p156 = por %p154, %p155
      %s158 = sadd.s32 %s157, 1
      %p161 = scmp.eq.s32.totalorder %s18, 1
      %p162 = scmp.ne.s32.totalorder %s157, %s159
      %p163 = scmp.eq.s32.totalorder %s18, 0
      %p164 = por %p162, %p163
      %p165 = scmp.ne.s32.totalorder %s157, %s159
      %p166 = scmp.eq.s32.totalorder %s23, 1
      %p167 = por %p165, %p166
      %p168 = scmp.ne.s32.totalorder %s159, %s160
      %p169 = scmp.eq.s32.totalorder %s23, 0
      %p170 = por %p168, %p169
      %p171 = scmp.ne.s32.totalorder %s159, %s160
      %p172 = scmp.eq.s32.totalorder %s24, 1
      %p173 = por %p171, %p172
      %p175 = scmp.ne.s32.totalorder %s160, %s174
      %p176 = scmp.eq.s32.totalorder %s24, 0
      %p177 = por %p175, %p176
      %s178 = ssub.s32 %s18, %s25
      %p179 = scmp.eq.s32.totalorder %s178, 0
      %s181 = sadd.s32 %s180, 1
      %s182 = scalar_select %p179, %s180, %s181
      %p185 = pneg %p179
      %p186 = scmp.eq.s32.totalorder %s18, 1
      %p187 = por %p185, %p186
      %p188 = scmp.ne.s32.totalorder %s180, %s183
      %p189 = scmp.eq.s32.totalorder %s18, 0
      %p190 = por %p188, %p189
      %p191 = scmp.ne.s32.totalorder %s180, %s183
      %p192 = scmp.eq.s32.totalorder %s23, 1
      %p193 = por %p191, %p192
      %p194 = scmp.ne.s32.totalorder %s183, %s184
      %p195 = scmp.eq.s32.totalorder %s23, 0
      %p196 = por %p194, %p195
      %p197 = scmp.ne.s32.totalorder %s183, %s184
      %p198 = scmp.eq.s32.totalorder %s24, 1
      %p199 = por %p197, %p198
      %p201 = scmp.ne.s32.totalorder %s184, %s200
      %p202 = scmp.eq.s32.totalorder %s24, 0
      %p203 = por %p201, %p202
      %p204 = scmp.le.s32.totalorder 1, %s18
      %p205 = scmp.lt.s32.totalorder %s18, 3
      %p206 = pnand %p204, %p205
      %p207 = pneg %p206
      // Predicated region
      $region9: #{tpu_custom_call.1} parent=5 // pred_check
        _
      $region10: #{tpu_custom_call.1} parent=5 // pred_check_branch
        %209 = sbr.rel (%p206) target = $region12
      $region11: #{tpu_custom_call.1} parent=5 // pred_region
        %s210 = ssub.s32 %s18, 1
        // Predicated region
        $region13: #{tpu_custom_call.1} parent=11 // pred_check
          %p211 = pneg %p65
        $region14: #{tpu_custom_call.1} parent=11 // pred_check_branch
          %213 = sbr.rel (%p211) target = $region16
        $region15: #{tpu_custom_call.1} parent=11 // pred_region
          _
        $region16: #{tpu_custom_call.1} parent=11 // pred_fallthru
          _
        // Predicated region
        $region17: #{tpu_custom_call.1} parent=11 // pred_check
          %p214 = pneg %p86
        $region18: #{tpu_custom_call.1} parent=11 // pred_check_branch
          %216 = sbr.rel (%p214) target = $region20
        $region19: #{tpu_custom_call.1} parent=11 // pred_region
          _
        $region20: #{tpu_custom_call.1} parent=11 // pred_fallthru
          _
        // Predicated region
        $region21: #{tpu_custom_call.1} parent=11 // pred_check
          %p217 = pneg %p107
        $region22: #{tpu_custom_call.1} parent=11 // pred_check_branch
          %219 = sbr.rel (%p217) target = $region24
        $region23: #{tpu_custom_call.1} parent=11 // pred_region
          _
        $region24: #{tpu_custom_call.1} parent=11 // pred_fallthru
          _
        // Predicated region
        $region25: #{tpu_custom_call.1} parent=11 // pred_check
          %p220 = pneg %p128
        $region26: #{tpu_custom_call.1} parent=11 // pred_check_branch
          %222 = sbr.rel (%p220) target = $region28
        $region27: #{tpu_custom_call.1} parent=11 // pred_region
          _
        $region28: #{tpu_custom_call.1} parent=11 // pred_fallthru
          _
        // Predicated region
        $region29: #{tpu_custom_call.1} parent=11 // pred_check
          %p223 = pneg %p149
        $region30: #{tpu_custom_call.1} parent=11 // pred_check_branch
          %225 = sbr.rel (%p223) target = $region32
        $region31: #{tpu_custom_call.1} parent=11 // pred_region
          _
        $region32: #{tpu_custom_call.1} parent=11 // pred_fallthru
          _
        // Predicated region
        $region33: #{tpu_custom_call.1} parent=11 // pred_check
          %p226 = pneg %p170
        $region34: #{tpu_custom_call.1} parent=11 // pred_check_branch
          %228 = sbr.rel (%p226) target = $region36
        $region35: #{tpu_custom_call.1} parent=11 // pred_region
          _
        $region36: #{tpu_custom_call.1} parent=11 // pred_fallthru
          _
      $region12: #{tpu_custom_call.1} parent=5 // pred_fallthru
        _
      %p229 = scmp.lt.s32.totalorder %s18, 2
      // Predicated region
      $region37: #{tpu_custom_call.1} parent=5 // pred_check
        %p230 = pneg %p229
      $region38: #{tpu_custom_call.1} parent=5 // pred_check_branch
        %232 = sbr.rel (%p230) target = $region40
      $region39: #{tpu_custom_call.1} parent=5 // pred_region
        // Predicated region
        $region41: #{tpu_custom_call.1} parent=39 // pred_check
          %p233 = pneg %p38
        $region42: #{tpu_custom_call.1} parent=39 // pred_check_branch
          %235 = sbr.rel (%p233) target = $region44
        $region43: #{tpu_custom_call.1} parent=39 // pred_region
          %p236 = scmp.lt.s32.totalorder %s18, 1
          %s237 = scalar_select %p236, %s18, 1
          %s238 = smul.addr %s237, 8
          %s239 = scalar_lea.vmem %s0, %s238
        $region44: #{tpu_custom_call.1} parent=39 // pred_fallthru
          _
      $region40: #{tpu_custom_call.1} parent=5 // pred_fallthru
        _
      %p240 = scmp.le.s32.totalorder 1, %s18
      %p241 = scmp.lt.s32.totalorder %s18, 3
      %p242 = pnand %p240, %p241
      %p243 = pneg %p242
      // Predicated region
      $region45: #{tpu_custom_call.1} parent=5 // pred_check
        _
      $region46: #{tpu_custom_call.1} parent=5 // pred_check_branch
        %245 = sbr.rel (%p242) target = $region48
      $region47: #{tpu_custom_call.1} parent=5 // pred_region
        %s246 = ssub.s32 %s18, 1
        %p247 = scmp.lt.s32.totalorder %s23, 1
        %s248 = scalar_select %p247, %s23, 1
        %s249 = smul.addr %s248, 8
        %s250 = scalar_lea.vmem %s0, %s249
        %p251 = pneg %p44
        %p252 = pneg %p41
        %p253 = pneg %p65
        %p254 = pneg %p62
        %p255 = pneg %p86
        %p256 = pneg %p83
        %p257 = pneg %p107
        %p258 = pneg %p104
        %p259 = pneg %p128
        %p260 = pneg %p125
        %p261 = pneg %p149
        %p262 = pneg %p146
        %p263 = pneg %p170
        %p264 = pneg %p167
        %p265 = pneg %p196
        %p266 = pneg %p193
        %s267 = sand.u32 %s183, 1
        %s268 = scalar_lea.sflag [#allocation4], %s267
        %s269 = sand.u32 %s183, 1
        %s270 = scalar_lea.vmem [#allocation3], %s269
        %p271 = scmp.lt.s32.totalorder %s23, 1
        %s272 = scalar_select %p271, %s23, 1
        %s273 = smul.addr %s272, 8
        %s274 = scalar_lea.vmem %s0, %s273
        %v276 = vld [vmem:[%s274] sm:$0xff]
        %v277 = vpack.c.bf16 %v276, %v276
        %v278 = vld [vmem:[%s1] sm:$0xf]
        %v279 = vld [vmem:[%s1 + $0x4] sm:$0xf]
        %v282 = vunpack.c.l.b16 %v278
        %v283 = vunpack.c.l.b16 %v279
        %v284 = vpack.c.b16 %v283, %v282
        %vm286 = vcmask 130048
        %v288 = vsel %vm286, %v277, 0
        %290 = vmatprep.subr.bf16.mxu0 0
        %291 = vmatpush1.bf16.msra.mxu0 %v284
        %292 = vmatprep.subr.bf16.mxu0 0
        %293 = vmatpush1.bf16.msra.mxu0 0
        %294 = vmatprep.subr.bf16.mxu0 0
        %295 = vmatpush1.bf16.msra.mxu0 0
        %296 = vmatprep.subr.bf16.mxu0 0
        %297 = vmatpush1.bf16.msra.mxu0 0
        %298 = vmatprep.subr.bf16.mxu0 0
        %299 = vmatpush1.bf16.msra.mxu0 0
        %300 = vmatprep.subr.bf16.mxu0 0
        %301 = vmatpush1.bf16.msra.mxu0 0
        %302 = vmatprep.subr.bf16.mxu0 0
        %303 = vmatpush1.bf16.msra.mxu0 0
        %304 = vmatprep.subr.bf16.mxu0 0
        %305 = vmatpush1.bf16.msra.mxu0 0
        %306 = vmatprep.subr.bf16.mxu0 0
        %307 = vmatpush1.bf16.msra.mxu0 0
        %308 = vmatprep.subr.bf16.mxu0 0
        %309 = vmatpush1.bf16.msra.mxu0 0
        %310 = vmatprep.subr.bf16.mxu0 0
        %311 = vmatpush1.bf16.msra.mxu0 0
        %312 = vmatprep.subr.bf16.mxu0 0
        %313 = vmatpush1.bf16.msra.mxu0 0
        %314 = vmatprep.subr.bf16.mxu0 0
        %315 = vmatpush1.bf16.msra.mxu0 0
        %316 = vmatprep.subr.bf16.mxu0 0
        %317 = vmatpush1.bf16.msra.mxu0 0
        %318 = vmatprep.subr.bf16.mxu0 0
        %319 = vmatpush1.bf16.msra.mxu0 0
        %320 = vmatprep.subr.bf16.mxu0 0
        %321 = vmatpush1.bf16.msra.mxu0 0
        %322 = vmatprep.mubr.bf16.mxu0 0
        %323 = vmatmul.mubr.bf16.gmra.mrb[0].mxu0 %v288
        %v324 = vpop.f32.mrb[0].mxu0
        %v325 = vadd.f32 0.0, %v324
        %v326 = vpop.f32.mrb[0].mxu0
        %v327 = vpop.f32.mrb[0].mxu0
        %v328 = vpop.f32.mrb[0].mxu0
        %329 = vdwg.mxu0
        %v330 = vld [vmem:[%s2] sm:$0x1]
        %v332 = vlaneseq
        %v333 = vshrl.u32 %v332, 7
        %v334 = vsub.s32 0, %v333
        %v335 = vrot.slane %v330, %v334
        %336 = vrot.lane.b32.xlu0 %v335, 8
        %v337 = vpop.permute.xlu0 %336
        %v339 = vadd.f32 %v325, %v337
        %v340 = vand.u32 2147483647, %v325
        %vm341 = vcmp.le.f32.partialorder %v340, 0.7853982
        %vm342 = vcmp.lt.s32.totalorder %v325, 0
        %v343 = vand.u32 %v325, 2139095040
        %v344 = vshrl.u32 %v343, 23
        %v345 = vsub.s32 %v344, 127
        %v346 = vand.u32 2147483647, %v325
        %v347 = vand.u32 %v346, 8388607
        %v348 = vor.u32 %v347, 8388608
        %v349 = vsub.s32 0, %v348
        %v350 = vadd.s32 %v345, 1
        %vm351 = vcmp.gt.s32.totalorder %v350, 0
        %v352 = vsel %vm351, %v350, 0
        %v353 = vshrl.u32 %v352, 5
        %v354 = vand.u32 %v352, 31
        %v355 = vsub.s32 32, %v354
        %v356 = vshrl.u32 683565275, %v355
        %v357 = vshll.u32 683565275, %v354
        %v358 = vshrl.u32 2475754826, %v355
        %v359 = vor.u32 %v357, %v358
        %v360 = vshll.u32 2475754826, %v354
        %v361 = vshrl.u32 2131351028, %v355
        %v362 = vor.u32 %v360, %v361
        %v363 = vshll.u32 2131351028, %v354
        %v364 = vshrl.u32 2102212464, %v355
        %v365 = vor.u32 %v363, %v364
        %v366 = vshll.u32 2102212464, %v354
        %v367 = vshrl.u32 920167782, %v355
        %v368 = vor.u32 %v366, %v367
        %v369 = vshll.u32 920167782, %v354
        %v370 = vshrl.u32 1326507024, %v355
        %v371 = vor.u32 %v369, %v370
        %vm372 = vcmp.lt.s32.totalorder %v353, 1
        %vm373 = vcmp.lt.s32.totalorder %v353, 2
        %vm374 = vcmp.lt.s32.totalorder %v353, 3
        %vm375 = vcmp.lt.s32.totalorder %v353, 4
        %v376 = vsel %vm372, %v356, %v359
        %v377 = vsel %vm375, %v365, 2102212464
        %v378 = vsel %vm374, %v362, %v377
        %v379 = vsel %vm373, %v376, %v378
        %v380 = vsel %vm372, %v359, %v362
        %v381 = vsel %vm375, %v368, 920167782
        %v382 = vsel %vm374, %v365, %v381
        %v383 = vsel %vm373, %v380, %v382
        %v384 = vsel %vm372, %v362, %v365
        %v385 = vsel %vm375, %v371, 1326507024
        %v386 = vsel %vm374, %v368, %v385
        %v387 = vsel %vm373, %v384, %v386
        %v388 = vshll.u32 %v348, 8
        %v389 = vmul.u32.u64.compose %v388, %v387
        %v390 = vextract.low.u32 %v389
        %v391 = vextract.high.u32 %v389
        %v392 = vmul.u32.u64.compose %v388, %v383
        %v393 = vextract.low.u32 %v392
        %v394 = vextract.high.u32 %v392
        %v395 = vmul.u32 %v388, %v379
        %v396 = vadd.s32 %v391, %v393
        %vm397 = vc.u32 %v391, %v393
        %v398 = vadd.s32 %v394, 1
        %v399 = vsel %vm397, %v398, %v394
        %v400 = vadd.s32 %v395, %v399
        %v401 = vadd.s32 %v400, 536870912
        %v402 = vshrl.u32 %v401, 30
        %v403 = vshll.u32 %v402, 30
        %v404 = vsub.s32 %v400, %v403
        %vm405 = vcmp.lt.s32.totalorder %v404, 0
        %v406 = vsub.s32 0, %v404
        %v407 = vsel %vm405, %v406, %v404
        %v408 = vclz %v407
        %v409 = vsub.s32 %v408, 2
        %vm410 = vcmp.gt.s32.totalorder 0, %v409
        %v411 = vsel %vm410, 0, %v409
        %v412 = vsub.s32 32, %v411
        %v413 = vshll.u32 %v404, %v411
        %v414 = vshrl.u32 %v396, %v412
        %v415 = vor.u32 %v413, %v414
        %v416 = vsub.s32 4294967266, %v411
        %v417 = vadd.s32 %v416, 127
        %v418 = vshll.u32 %v417, 23
        %v419 = vor.u32 4788187, %v418
        %v420 = vand.u32 2147483647, %v419
        %v422 = vcvt.s32.f32 %v415
        %v423 = vmul.f32 %v422, %v420
        %v424 = vxor.u32 %v423, 2147483648
        %v425 = vsel %vm342, %v424, %v423
        %v426 = vsub.s32 4, %v402
        %v427 = vsel %vm342, %v426, %v402
        %v428 = vsel %vm341, %v325, %v425
        %v429 = vsel %vm341, 0, %v427
        %v430 = vcosq.f32.pop %v428
        %v431 = vsinq.f32.pop %v428
        %vm432 = vweird.f32 %v325
        %v433 = vand.u32 %v429, 3
        %vm434 = vcmp.lt.s32.totalorder %v433, 2
        %vm435 = vcmp.eq.s32.totalorder %v433, 0
        %v436 = vxor.u32 %v431, 2147483648
        %v437 = vsel %vm435, %v430, %v436
        %vm438 = vcmp.eq.s32.totalorder %v433, 2
        %v439 = vxor.u32 %v430, 2147483648
        %v440 = vsel %vm438, %v439, %v431
        %v441 = vsel %vm434, %v437, %v440
        %v442 = vsel %vm432, nan, %v441
        %v443 = vand.u32 2147483647, %v325
        %vm444 = vcmp.le.f32.partialorder %v443, 0.7853982
        %vm445 = vcmp.lt.s32.totalorder %v325, 0
        %v446 = vand.u32 %v325, 2139095040
        %v447 = vshrl.u32 %v446, 23
        %v448 = vsub.s32 %v447, 127
        %v449 = vand.u32 2147483647, %v325
        %v450 = vand.u32 %v449, 8388607
        %v451 = vor.u32 %v450, 8388608
        %v452 = vsub.s32 0, %v451
        %v453 = vadd.s32 %v448, 1
        %vm454 = vcmp.gt.s32.totalorder %v453, 0
        %v455 = vsel %vm454, %v453, 0
        %v456 = vshrl.u32 %v455, 5
        %v457 = vand.u32 %v455, 31
        %v458 = vsub.s32 32, %v457
        %v459 = vshrl.u32 683565275, %v458
        %v460 = vshll.u32 683565275, %v457
        %v461 = vshrl.u32 2475754826, %v458
        %v462 = vor.u32 %v460, %v461
        %v463 = vshll.u32 2475754826, %v457
        %v464 = vshrl.u32 2131351028, %v458
        %v465 = vor.u32 %v463, %v464
        %v466 = vshll.u32 2131351028, %v457
        %v467 = vshrl.u32 2102212464, %v458
        %v468 = vor.u32 %v466, %v467
        %v469 = vshll.u32 2102212464, %v457
        %v470 = vshrl.u32 920167782, %v458
        %v471 = vor.u32 %v469, %v470
        %v472 = vshll.u32 920167782, %v457
        %v473 = vshrl.u32 1326507024, %v458
        %v474 = vor.u32 %v472, %v473
        %vm475 = vcmp.lt.s32.totalorder %v456, 1
        %vm476 = vcmp.lt.s32.totalorder %v456, 2
        %vm477 = vcmp.lt.s32.totalorder %v456, 3
        %vm478 = vcmp.lt.s32.totalorder %v456, 4
        %v479 = vsel %vm475, %v459, %v462
        %v480 = vsel %vm478, %v468, 2102212464
        %v481 = vsel %vm477, %v465, %v480
        %v482 = vsel %vm476, %v479, %v481
        %v483 = vsel %vm475, %v462, %v465
        %v484 = vsel %vm478, %v471, 920167782
        %v485 = vsel %vm477, %v468, %v484
        %v486 = vsel %vm476, %v483, %v485
        %v487 = vsel %vm475, %v465, %v468
        %v488 = vsel %vm478, %v474, 1326507024
        %v489 = vsel %vm477, %v471, %v488
        %v490 = vsel %vm476, %v487, %v489
        %v491 = vshll.u32 %v451, 8
        %v492 = vmul.u32.u64.compose %v491, %v490
        %v493 = vextract.low.u32 %v492
        %v494 = vextract.high.u32 %v492
        %v495 = vmul.u32.u64.compose %v491, %v486
        %v496 = vextract.low.u32 %v495
        %v497 = vextract.high.u32 %v495
        %v498 = vmul.u32 %v491, %v482
        %v499 = vadd.s32 %v494, %v496
        %vm500 = vc.u32 %v494, %v496
        %v501 = vadd.s32 %v497, 1
        %v502 = vsel %vm500, %v501, %v497
        %v503 = vadd.s32 %v498, %v502
        %v504 = vadd.s32 %v503, 536870912
        %v505 = vshrl.u32 %v504, 30
        %v506 = vshll.u32 %v505, 30
        %v507 = vsub.s32 %v503, %v506
        %vm508 = vcmp.lt.s32.totalorder %v507, 0
        %v509 = vsub.s32 0, %v507
        %v510 = vsel %vm508, %v509, %v507
        %v511 = vclz %v510
        %v512 = vsub.s32 %v511, 2
        %vm513 = vcmp.gt.s32.totalorder 0, %v512
        %v514 = vsel %vm513, 0, %v512
        %v515 = vsub.s32 32, %v514
        %v516 = vshll.u32 %v507, %v514
        %v517 = vshrl.u32 %v499, %v515
        %v518 = vor.u32 %v516, %v517
        %v519 = vsub.s32 4294967266, %v514
        %v520 = vadd.s32 %v519, 127
        %v521 = vshll.u32 %v520, 23
        %v522 = vor.u32 4788187, %v521
        %v523 = vand.u32 2147483647, %v522
        %v525 = vcvt.s32.f32 %v518
        %v526 = vmul.f32 %v525, %v523
        %v527 = vxor.u32 %v526, 2147483648
        %v528 = vsel %vm445, %v527, %v526
        %v529 = vsub.s32 4, %v505
        %v530 = vsel %vm445, %v529, %v505
        %v531 = vsel %vm444, %v325, %v528
        %v532 = vsel %vm444, 0, %v530
        %v533 = vcosq.f32.pop %v531
        %v534 = vsinq.f32.pop %v531
        %vm535 = vweird.f32 %v325
        %v536 = vadd.s32 %v532, 3
        %v537 = vand.u32 %v536, 3
        %vm538 = vcmp.lt.s32.totalorder %v537, 2
        %vm539 = vcmp.eq.s32.totalorder %v537, 0
        %v540 = vxor.u32 %v534, 2147483648
        %v541 = vsel %vm539, %v533, %v540
        %vm542 = vcmp.eq.s32.totalorder %v537, 2
        %v543 = vxor.u32 %v533, 2147483648
        %v544 = vsel %vm542, %v543, %v534
        %v545 = vsel %vm538, %v541, %v544
        %v546 = vsel %vm535, nan, %v545
        %v547 = vmul.f32 %v339, 0.70710677
        %vm548 = vcmp.ge.f32.partialorder %v547, 0.0
        %v549 = vsel %vm548, 1.0, -1.0
        %v550 = vand.u32 2147483647, %v547
        %v551 = vmul.f32 %v550, 0.3275911
        %v552 = vadd.f32 %v551, 1.0
        %v553 = vrcp.pop %v552
        %v554 = vmul.f32 1.0, %v553
        %v555 = vmul.f32 %v554, 1.0614054
        %v556 = vadd.f32 %v555, -1.4531521
        %v557 = vmul.f32 %v554, %v556
        %v558 = vadd.f32 %v557, 1.4214138
        %v559 = vmul.f32 %v554, %v558
        %v560 = vadd.f32 %v559, -0.28449672
        %v561 = vmul.f32 %v554, %v560
        %v562 = vadd.f32 %v561, 0.2548296
        %v563 = vmul.f32 %v554, %v562
        %v564 = vmul.f32 %v550, %v550
        %v565 = vsub.f32 0.0, %v564
        %v566 = vmul.f32 %v565, 1.442695
        %v567 = vpow.pop %v566
        %v568 = vmul.f32 %v563, %v567
        %v569 = vsub.f32 1.0, %v568
        %v570 = vmul.f32 %v549, %v569
        %v571 = vmul.f32 %v339, 0.5
        %v572 = vadd.f32 %v570, 1.0
        %v573 = vmul.f32 %v571, %v572
        %575 = vrot.lane.b32.xlu0 %v546, 8
        %v576 = vpop.permute.xlu0 %575
        %579 = vrot.lane.b32.xlu0 %v573, 8
        %v580 = vpop.permute.xlu0 %579
        %vm582 = vcmask 64512
        %v583 = vsel %vm582, %v442, %v576
        %v584 = vsel %vm286, %v583, %v580
        %v585 = vpack.c.bf16 %v584, %v584
        %v586 = vld [vmem:[%s3] sm:$0xf]
        %v587 = vld [vmem:[%s3 + $0x4] sm:$0xf]
        %v588 = vld [vmem:[%s3 + $0x8] sm:$0xf]
        %v589 = vld [vmem:[%s3 + $0xc] sm:$0xf]
        %v590 = vld [vmem:[%s3 + $0x10] sm:$0xf]
        %v591 = vld [vmem:[%s3 + $0x14] sm:$0xf]
        %v598 = vunpack.c.l.b16 %v586
        %v599 = vunpack.c.l.b16 %v587
        %v600 = vunpack.c.l.b16 %v588
        %v601 = vunpack.c.l.b16 %v589
        %v602 = vunpack.c.l.b16 %v590
        %v603 = vunpack.c.l.b16 %v591
        %v604 = vpack.c.b16 %v599, %v598
        %v605 = vpack.c.b16 %v601, %v600
        %v606 = vpack.c.b16 %v603, %v602
        %vm610 = vcmask 392192
        %v612 = vsel %vm610, %v585, 0
        %614 = vmatprep.subr.bf16.mxu0 0
        %615 = vmatpush1.bf16.msra.mxu0 %v604
        %616 = vmatprep.subr.bf16.mxu0 0
        %617 = vmatpush1.bf16.msra.mxu0 %v605
        %618 = vmatprep.subr.bf16.mxu0 0
        %619 = vmatpush1.bf16.msra.mxu0 %v606
        %620 = vmatprep.subr.bf16.mxu0 0
        %621 = vmatpush1.bf16.msra.mxu0 0
        %622 = vmatprep.subr.bf16.mxu0 0
        %623 = vmatpush1.bf16.msra.mxu0 0
        %624 = vmatprep.subr.bf16.mxu0 0
        %625 = vmatpush1.bf16.msra.mxu0 0
        %626 = vmatprep.subr.bf16.mxu0 0
        %627 = vmatpush1.bf16.msra.mxu0 0
        %628 = vmatprep.subr.bf16.mxu0 0
        %629 = vmatpush1.bf16.msra.mxu0 0
        %630 = vmatprep.subr.bf16.mxu0 0
        %631 = vmatpush1.bf16.msra.mxu0 0
        %632 = vmatprep.subr.bf16.mxu0 0
        %633 = vmatpush1.bf16.msra.mxu0 0
        %634 = vmatprep.subr.bf16.mxu0 0
        %635 = vmatpush1.bf16.msra.mxu0 0
        %636 = vmatprep.subr.bf16.mxu0 0
        %637 = vmatpush1.bf16.msra.mxu0 0
        %638 = vmatprep.subr.bf16.mxu0 0
        %639 = vmatpush1.bf16.msra.mxu0 0
        %640 = vmatprep.subr.bf16.mxu0 0
        %641 = vmatpush1.bf16.msra.mxu0 0
        %642 = vmatprep.subr.bf16.mxu0 0
        %643 = vmatpush1.bf16.msra.mxu0 0
        %644 = vmatprep.subr.bf16.mxu0 0
        %645 = vmatpush1.bf16.msra.mxu0 0
        %646 = vmatprep.mubr.bf16.mxu0 0
        %647 = vmatmul.mubr.bf16.gmra.mrb[0].mxu0 %v612
        %v648 = vpop.f32.mrb[0].mxu0
        %v649 = vadd.f32 0.0, %v648
        %v650 = vpop.f32.mrb[0].mxu0
        %v651 = vpop.f32.mrb[0].mxu0
        %v652 = vpop.f32.mrb[0].mxu0
        %653 = vdwg.mxu0
        %v654 = vld [vmem:[%s4] sm:$0x1]
        %v656 = vlaneseq
        %v657 = vshrl.u32 %v656, 7
        %v658 = vsub.s32 0, %v657
        %v659 = vrot.slane %v654, %v658
        %660 = vrot.lane.b32.xlu0 %v659, 8
        %v661 = vpop.permute.xlu0 %660
        %v663 = vadd.f32 %v649, %v661
        %v664 = vand.u32 2147483647, %v649
        %vm665 = vcmp.le.f32.partialorder %v664, 0.7853982
        %vm666 = vcmp.lt.s32.totalorder %v649, 0
        %v667 = vand.u32 %v649, 2139095040
        %v668 = vshrl.u32 %v667, 23
        %v669 = vsub.s32 %v668, 127
        %v670 = vand.u32 2147483647, %v649
        %v671 = vand.u32 %v670, 8388607
        %v672 = vor.u32 %v671, 8388608
        %v673 = vsub.s32 0, %v672
        %v674 = vadd.s32 %v669, 1
        %vm675 = vcmp.gt.s32.totalorder %v674, 0
        %v676 = vsel %vm675, %v674, 0
        %v677 = vshrl.u32 %v676, 5
        %v678 = vand.u32 %v676, 31
        %v679 = vsub.s32 32, %v678
        %v680 = vshrl.u32 683565275, %v679
        %v681 = vshll.u32 683565275, %v678
        %v682 = vshrl.u32 2475754826, %v679
        %v683 = vor.u32 %v681, %v682
        %v684 = vshll.u32 2475754826, %v678
        %v685 = vshrl.u32 2131351028, %v679
        %v686 = vor.u32 %v684, %v685
        %v687 = vshll.u32 2131351028, %v678
        %v688 = vshrl.u32 2102212464, %v679
        %v689 = vor.u32 %v687, %v688
        %v690 = vshll.u32 2102212464, %v678
        %v691 = vshrl.u32 920167782, %v679
        %v692 = vor.u32 %v690, %v691
        %v693 = vshll.u32 920167782, %v678
        %v694 = vshrl.u32 1326507024, %v679
        %v695 = vor.u32 %v693, %v694
        %vm696 = vcmp.lt.s32.totalorder %v677, 1
        %vm697 = vcmp.lt.s32.totalorder %v677, 2
        %vm698 = vcmp.lt.s32.totalorder %v677, 3
        %vm699 = vcmp.lt.s32.totalorder %v677, 4
        %v700 = vsel %vm696, %v680, %v683
        %v701 = vsel %vm699, %v689, 2102212464
        %v702 = vsel %vm698, %v686, %v701
        %v703 = vsel %vm697, %v700, %v702
        %v704 = vsel %vm696, %v683, %v686
        %v705 = vsel %vm699, %v692, 920167782
        %v706 = vsel %vm698, %v689, %v705
        %v707 = vsel %vm697, %v704, %v706
        %v708 = vsel %vm696, %v686, %v689
        %v709 = vsel %vm699, %v695, 1326507024
        %v710 = vsel %vm698, %v692, %v709
        %v711 = vsel %vm697, %v708, %v710
        %v712 = vshll.u32 %v672, 8
        %v713 = vmul.u32.u64.compose %v712, %v711
        %v714 = vextract.low.u32 %v713
        %v715 = vextract.high.u32 %v713
        %v716 = vmul.u32.u64.compose %v712, %v707
        %v717 = vextract.low.u32 %v716
        %v718 = vextract.high.u32 %v716
        %v719 = vmul.u32 %v712, %v703
        %v720 = vadd.s32 %v715, %v717
        %vm721 = vc.u32 %v715, %v717
        %v722 = vadd.s32 %v718, 1
        %v723 = vsel %vm721, %v722, %v718
        %v724 = vadd.s32 %v719, %v723
        %v725 = vadd.s32 %v724, 536870912
        %v726 = vshrl.u32 %v725, 30
        %v727 = vshll.u32 %v726, 30
        %v728 = vsub.s32 %v724, %v727
        %vm729 = vcmp.lt.s32.totalorder %v728, 0
        %v730 = vsub.s32 0, %v728
        %v731 = vsel %vm729, %v730, %v728
        %v732 = vclz %v731
        %v733 = vsub.s32 %v732, 2
        %vm734 = vcmp.gt.s32.totalorder 0, %v733
        %v735 = vsel %vm734, 0, %v733
        %v736 = vsub.s32 32, %v735
        %v737 = vshll.u32 %v728, %v735
        %v738 = vshrl.u32 %v720, %v736
        %v739 = vor.u32 %v737, %v738
        %v740 = vsub.s32 4294967266, %v735
        %v741 = vadd.s32 %v740, 127
        %v742 = vshll.u32 %v741, 23
        %v743 = vor.u32 4788187, %v742
        %v744 = vand.u32 2147483647, %v743
        %v746 = vcvt.s32.f32 %v739
        %v747 = vmul.f32 %v746, %v744
        %v748 = vxor.u32 %v747, 2147483648
        %v749 = vsel %vm666, %v748, %v747
        %v750 = vsub.s32 4, %v726
        %v751 = vsel %vm666, %v750, %v726
        %v752 = vsel %vm665, %v649, %v749
        %v753 = vsel %vm665, 0, %v751
        %v754 = vcosq.f32.pop %v752
        %v755 = vsinq.f32.pop %v752
        %vm756 = vweird.f32 %v649
        %v757 = vand.u32 %v753, 3
        %vm758 = vcmp.lt.s32.totalorder %v757, 2
        %vm759 = vcmp.eq.s32.totalorder %v757, 0
        %v760 = vxor.u32 %v755, 2147483648
        %v761 = vsel %vm759, %v754, %v760
        %vm762 = vcmp.eq.s32.totalorder %v757, 2
        %v763 = vxor.u32 %v754, 2147483648
        %v764 = vsel %vm762, %v763, %v755
        %v765 = vsel %vm758, %v761, %v764
        %v766 = vsel %vm756, nan, %v765
        %v767 = vand.u32 2147483647, %v649
        %vm768 = vcmp.le.f32.partialorder %v767, 0.7853982
        %vm769 = vcmp.lt.s32.totalorder %v649, 0
        %v770 = vand.u32 %v649, 2139095040
        %v771 = vshrl.u32 %v770, 23
        %v772 = vsub.s32 %v771, 127
        %v773 = vand.u32 2147483647, %v649
        %v774 = vand.u32 %v773, 8388607
        %v775 = vor.u32 %v774, 8388608
        %v776 = vsub.s32 0, %v775
        %v777 = vadd.s32 %v772, 1
        %vm778 = vcmp.gt.s32.totalorder %v777, 0
        %v779 = vsel %vm778, %v777, 0
        %v780 = vshrl.u32 %v779, 5
        %v781 = vand.u32 %v779, 31
        %v782 = vsub.s32 32, %v781
        %v783 = vshrl.u32 683565275, %v782
        %v784 = vshll.u32 683565275, %v781
        %v785 = vshrl.u32 2475754826, %v782
        %v786 = vor.u32 %v784, %v785
        %v787 = vshll.u32 2475754826, %v781
        %v788 = vshrl.u32 2131351028, %v782
        %v789 = vor.u32 %v787, %v788
        %v790 = vshll.u32 2131351028, %v781
        %v791 = vshrl.u32 2102212464, %v782
        %v792 = vor.u32 %v790, %v791
        %v793 = vshll.u32 2102212464, %v781
        %v794 = vshrl.u32 920167782, %v782
        %v795 = vor.u32 %v793, %v794
        %v796 = vshll.u32 920167782, %v781
        %v797 = vshrl.u32 1326507024, %v782
        %v798 = vor.u32 %v796, %v797
        %vm799 = vcmp.lt.s32.totalorder %v780, 1
        %vm800 = vcmp.lt.s32.totalorder %v780, 2
        %vm801 = vcmp.lt.s32.totalorder %v780, 3
        %vm802 = vcmp.lt.s32.totalorder %v780, 4
        %v803 = vsel %vm799, %v783, %v786
        %v804 = vsel %vm802, %v792, 2102212464
        %v805 = vsel %vm801, %v789, %v804
        %v806 = vsel %vm800, %v803, %v805
        %v807 = vsel %vm799, %v786, %v789
        %v808 = vsel %vm802, %v795, 920167782
        %v809 = vsel %vm801, %v792, %v808
        %v810 = vsel %vm800, %v807, %v809
        %v811 = vsel %vm799, %v789, %v792
        %v812 = vsel %vm802, %v798, 1326507024
        %v813 = vsel %vm801, %v795, %v812
        %v814 = vsel %vm800, %v811, %v813
        %v815 = vshll.u32 %v775, 8
        %v816 = vmul.u32.u64.compose %v815, %v814
        %v817 = vextract.low.u32 %v816
        %v818 = vextract.high.u32 %v816
        %v819 = vmul.u32.u64.compose %v815, %v810
        %v820 = vextract.low.u32 %v819
        %v821 = vextract.high.u32 %v819
        %v822 = vmul.u32 %v815, %v806
        %v823 = vadd.s32 %v818, %v820
        %vm824 = vc.u32 %v818, %v820
        %v825 = vadd.s32 %v821, 1
        %v826 = vsel %vm824, %v825, %v821
        %v827 = vadd.s32 %v822, %v826
        %v828 = vadd.s32 %v827, 536870912
        %v829 = vshrl.u32 %v828, 30
        %v830 = vshll.u32 %v829, 30
        %v831 = vsub.s32 %v827, %v830
        %vm832 = vcmp.lt.s32.totalorder %v831, 0
        %v833 = vsub.s32 0, %v831
        %v834 = vsel %vm832, %v833, %v831
        %v835 = vclz %v834
        %v836 = vsub.s32 %v835, 2
        %vm837 = vcmp.gt.s32.totalorder 0, %v836
        %v838 = vsel %vm837, 0, %v836
        %v839 = vsub.s32 32, %v838
        %v840 = vshll.u32 %v831, %v838
        %v841 = vshrl.u32 %v823, %v839
        %v842 = vor.u32 %v840, %v841
        %v843 = vsub.s32 4294967266, %v838
        %v844 = vadd.s32 %v843, 127
        %v845 = vshll.u32 %v844, 23
        %v846 = vor.u32 4788187, %v845
        %v847 = vand.u32 2147483647, %v846
        %v849 = vcvt.s32.f32 %v842
        %v850 = vmul.f32 %v849, %v847
        %v851 = vxor.u32 %v850, 2147483648
        %v852 = vsel %vm769, %v851, %v850
        %v853 = vsub.s32 4, %v829
        %v854 = vsel %vm769, %v853, %v829
        %v855 = vsel %vm768, %v649, %v852
        %v856 = vsel %vm768, 0, %v854
        %v857 = vcosq.f32.pop %v855
        %v858 = vsinq.f32.pop %v855
        %vm859 = vweird.f32 %v649
        %v860 = vadd.s32 %v856, 3
        %v861 = vand.u32 %v860, 3
        %vm862 = vcmp.lt.s32.totalorder %v861, 2
        %vm863 = vcmp.eq.s32.totalorder %v861, 0
        %v864 = vxor.u32 %v858, 2147483648
        %v865 = vsel %vm863, %v857, %v864
        %vm866 = vcmp.eq.s32.totalorder %v861, 2
        %v867 = vxor.u32 %v857, 2147483648
        %v868 = vsel %vm866, %v867, %v858
        %v869 = vsel %vm862, %v865, %v868
        %v870 = vsel %vm859, nan, %v869
        %v871 = vmul.f32 %v663, 0.70710677
        %vm872 = vcmp.ge.f32.partialorder %v871, 0.0
        %v873 = vsel %vm872, 1.0, -1.0
        %v874 = vand.u32 2147483647, %v871
        %v875 = vmul.f32 %v874, 0.3275911
        %v876 = vadd.f32 %v875, 1.0
        %v877 = vrcp.pop %v876
        %v878 = vmul.f32 1.0, %v877
        %v879 = vmul.f32 %v878, 1.0614054
        %v880 = vadd.f32 %v879, -1.4531521
        %v881 = vmul.f32 %v878, %v880
        %v882 = vadd.f32 %v881, 1.4214138
        %v883 = vmul.f32 %v878, %v882
        %v884 = vadd.f32 %v883, -0.28449672
        %v885 = vmul.f32 %v878, %v884
        %v886 = vadd.f32 %v885, 0.2548296
        %v887 = vmul.f32 %v878, %v886
        %v888 = vmul.f32 %v874, %v874
        %v889 = vsub.f32 0.0, %v888
        %v890 = vmul.f32 %v889, 1.442695
        %v891 = vpow.pop %v890
        %v892 = vmul.f32 %v887, %v891
        %v893 = vsub.f32 1.0, %v892
        %v894 = vmul.f32 %v873, %v893
        %v895 = vmul.f32 %v663, 0.5
        %v896 = vadd.f32 %v894, 1.0
        %v897 = vmul.f32 %v895, %v896
        %899 = vrot.lane.b32.xlu0 %v870, 8
        %v900 = vpop.permute.xlu0 %899
        %903 = vrot.lane.b32.xlu0 %v897, 8
        %v904 = vpop.permute.xlu0 %903
        %v906 = vsel %vm582, %v766, %v900
        %v907 = vsel %vm286, %v906, %v904
        %v908 = vld [vmem:[%s5] sm:$0x1]
        %v910 = vlaneseq
        %v911 = vshrl.u32 %v910, 7
        %v912 = vsub.s32 0, %v911
        %v913 = vrot.slane %v908, %v912
        %v915 = vmul.f32 %v907, %v913
        %v916 = vsel %vm610, %v915, 0.0
        %917 = vadd.xlane.f32.xlu0 %v916
        %v918 = vpop.xlane.xlu0 %917
        %v919 = vld [vmem:[#allocation2] sm:$0x1]
        %v921 = vlaneseq
        %v922 = vshrl.u32 %v921, 7
        %v923 = vsub.s32 0, %v922
        %v924 = vrot.slane %v919, %v923
        %v926 = vadd.f32 %v918, %v924
        %928 = vset.pattern.permute.xlu0 0
        %929 = vperm.xlu0 %928, %v926
        %v930 = vpop.permute.xlu0 %929
        %v931 = vlaneseq
        %v932 = vand.u32 %v931, 127
        %v933 = vlaneseq
        %v934 = vshrl.u32 %v933, 7
        %v935 = vsub.s32 %v932, %v934
        %v936 = vrot.slane %v930, %v935
        %vm938 = vcmask 57344
        %939 = vst.msk [vmem:[%s270] sm:$0x1] %vm938, %v936
        %s940 = sand.u32 %s183, 1
        %s941 = scalar_lea.sflag [#allocation4], %s940
        %s942 = sand.u32 %s183, 1
        %s943 = scalar_lea.vmem [#allocation3], %s942
        // Predicated region
        $region49: #{tpu_custom_call.1} parent=47 // pred_check
          %p944 = pneg %p193
        $region50: #{tpu_custom_call.1} parent=47 // pred_check_branch
          %946 = sbr.rel (%p944) target = $region52
        $region51: #{tpu_custom_call.1} parent=47 // pred_region
          %s948 = ssub.s32 16, 16
          %949 = vsyncadd %s941, %s948
          %s950 = smul.addr %s23, 16
          %s951 = scalar_lea.hbm %s7, %s950
          %s953 = sshll.u32 %s943, 4
          %s954 = int_to_ptr.vmem [resolvable:$true] %s953
          %956 = dma.vmem_to_hbm [thread:$0]  %s954, 16, %s951, %s941
        $region52: #{tpu_custom_call.1} parent=47 // pred_fallthru
          _
      $region48: #{tpu_custom_call.1} parent=5 // pred_fallthru
        _
      %p957 = scmp.le.s32.totalorder 2, %s18
      // Predicated region
      $region53: #{tpu_custom_call.1} parent=5 // pred_check
        %p958 = pneg %p957
      $region54: #{tpu_custom_call.1} parent=5 // pred_check_branch
        %960 = sbr.rel (%p958) target = $region56
      $region55: #{tpu_custom_call.1} parent=5 // pred_region
        %s961 = ssub.s32 %s18, 2
        // Predicated region
        $region57: #{tpu_custom_call.1} parent=55 // pred_check
          %p962 = pneg %p199
        $region58: #{tpu_custom_call.1} parent=55 // pred_check_branch
          %964 = sbr.rel (%p962) target = $region60
        $region59: #{tpu_custom_call.1} parent=55 // pred_region
          %s965 = sand.u32 %s184, 1
          %s966 = scalar_lea.sflag [#allocation4], %s965
          %s967 = sand.u32 %s184, 1
          %s968 = scalar_lea.vmem [#allocation3], %s967
          %969 = dma.done %s966, 16
        $region60: #{tpu_custom_call.1} parent=55 // pred_fallthru
          _
      $region56: #{tpu_custom_call.1} parent=5 // pred_fallthru
        _
    $region6: #{tpu_custom_call.1} parent=1 // loop_footer
      %s22 = sadd.s32 1, %s18
    $region7: #{tpu_custom_call.1} parent=1 // loop_footer_branch
      %17 = sbr.rel target = $region3
    $region8: #{tpu_custom_call.1} parent=1 // loop_exit
      _
    %970 = vsyncpa [#allocation4], 1
    %s971 = scalar_lea.sflag [#allocation4], 1
    %972 = vsyncpa %s971, 1

// kernel: tpu_custom_call.1
$region0: #{tpu_custom_call.1}
  #allocation0 [shape = 'u32[]', space=smem, size = 0x4, offset = 0x4, fixed_abs, tag = 'smem constant byte address 0x4 - core index']
  #allocation1 [shape = 'u32[144,128]{1,0:T(1,128)}', space=vmem, size = 0x12000, scoped, tag = 'internal scratch']
  #allocation2 [shape = 'f32[1,1]{1,0:T(1,128)S(1)}', space=vmem, size = 0x200, scoped, tag = 'scoped memory for tpu_custom_call.1']
  %s0 = inlined_call_operand.vmem [shape: f32[16,16], index: 0, kind: input, shape index: {}]
  %s1 = inlined_call_operand.vmem [shape: bf16[16,40], index: 1, kind: input, shape index: {}]
  %s2 = inlined_call_operand.vmem [shape: f32[1,32], index: 2, kind: input, shape index: {}]
  %s3 = inlined_call_operand.vmem [shape: bf16[48,40], index: 3, kind: input, shape index: {}]
  %s4 = inlined_call_operand.vmem [shape: f32[1,32], index: 4, kind: input, shape index: {}]
  %s5 = inlined_call_operand.vmem [shape: f32[1,48], index: 5, kind: input, shape index: {}]
  %s6 = inlined_call_operand.<no memory space> [shape: f32[1,1], index: 6, kind: input, shape index: {}]
  %s7 = inlined_call_operand.hbm [shape: f32[2,1,8], index: 7, kind: output, shape index: {}]
  %s8 = sld [smem:[#allocation0]]
  $region61: #{tpu_custom_call.1} parent=0
    _
  %s10 = ssub.s32 1, %s8
  %s11 = scalar_select 0, %s10, %s8
  %v12 = vstv %s6
  %13 = vst [vmem:[#allocation2] sm:$0x1] %v12
  $region1: #{tpu_custom_call.1} parent=0
    #allocation3 [shape = 'u8[1024]{0}', space=vmem, size = 0x400, scoped, tag = 'output window, operand 0']
    #allocation4 [shape = 's32[2]{0}', space=sflag, size = 0x8, scoped, tag = 'scoped memory for tpu_custom_call.1']
    %14 = vsyncpa [#allocation4], 0
    %s15 = scalar_lea.sflag [#allocation4], 1
    %16 = vsyncpa %s15, 0
    loop: start=0, step=1, limit=4
    $region2: #{tpu_custom_call.1} parent=1 // loop_pre_header
      _
    $region3: #{tpu_custom_call.1} parent=1 // loop_header
      %s18 = sphi 0, %s22
      %p19 = scmp.ge.s32.totalorder %s18, 4
      %s28 = sphi 0, %s30
      %s31 = sphi 0, %s28
      %s32 = sphi 0, %s31
      %s48 = sphi 0, %s32
      %s52 = sphi 0, %s52
      %s54 = sphi 0, %s52
      %s55 = sphi 0, %s54
      %s69 = sphi 0, %s55
      %s73 = sphi 0, %s73
      %s75 = sphi 0, %s73
      %s76 = sphi 0, %s75
      %s90 = sphi 0, %s76
      %s94 = sphi 0, %s94
      %s96 = sphi 0, %s94
      %s97 = sphi 0, %s96
      %s111 = sphi 0, %s97
      %s115 = sphi 0, %s115
      %s117 = sphi 0, %s115
      %s118 = sphi 0, %s117
      %s132 = sphi 0, %s118
      %s136 = sphi 0, %s136
      %s138 = sphi 0, %s136
      %s139 = sphi 0, %s138
      %s153 = sphi 0, %s139
      %s157 = sphi 0, %s157
      %s159 = sphi 0, %s157
      %s160 = sphi 0, %s159
      %s174 = sphi 0, %s160
      %s180 = sphi 0, %s182
      %s183 = sphi 0, %s180
      %s184 = sphi 0, %s183
      %s200 = sphi 0, %s184
    $region4: #{tpu_custom_call.1} parent=1 // loop_header_branch
      %21 = sbr.rel (%p19) target = $region8
    $region5: #{tpu_custom_call.1} parent=1 // loop_body
      %s23 = ssub.s32 %s18, 1
      %s24 = ssub.s32 %s18, 2
      %s25 = sadd.s32 %s18, 1
      %s26 = ssub.s32 %s18, %s25
      %p27 = scmp.eq.s32.totalorder %s26, 0
      %s29 = sadd.s32 %s28, 1
      %s30 = scalar_select %p27, %s28, %s29
      %p33 = pneg %p27
      %p34 = scmp.eq.s32.totalorder %s18, 1
      %p35 = por %p33, %p34
      %p36 = scmp.ne.s32.totalorder %s28, %s31
      %p37 = scmp.eq.s32.totalorder %s18, 0
      %p38 = por %p36, %p37
      %p39 = scmp.ne.s32.totalorder %s28, %s31
      %p40 = scmp.eq.s32.totalorder %s23, 1
      %p41 = por %p39, %p40
      %p42 = scmp.ne.s32.totalorder %s31, %s32
      %p43 = scmp.eq.s32.totalorder %s23, 0
      %p44 = por %p42, %p43
      %p45 = scmp.ne.s32.totalorder %s31, %s32
      %p46 = scmp.eq.s32.totalorder %s24, 1
      %p47 = por %p45, %p46
      %p49 = scmp.ne.s32.totalorder %s32, %s48
      %p50 = scmp.eq.s32.totalorder %s24, 0
      %p51 = por %p49, %p50
      %s53 = sadd.s32 %s52, 1
      %p56 = scmp.eq.s32.totalorder %s18, 1
      %p57 = scmp.ne.s32.totalorder %s52, %s54
      %p58 = scmp.eq.s32.totalorder %s18, 0
      %p59 = por %p57, %p58
      %p60 = scmp.ne.s32.totalorder %s52, %s54
      %p61 = scmp.eq.s32.totalorder %s23, 1
      %p62 = por %p60, %p61
      %p63 = scmp.ne.s32.totalorder %s54, %s55
      %p64 = scmp.eq.s32.totalorder %s23, 0
      %p65 = por %p63, %p64
      %p66 = scmp.ne.s32.totalorder %s54, %s55
      %p67 = scmp.eq.s32.totalorder %s24, 1
      %p68 = por %p66, %p67
      %p70 = scmp.ne.s32.totalorder %s55, %s69
      %p71 = scmp.eq.s32.totalorder %s24, 0
      %p72 = por %p70, %p71
      %s74 = sadd.s32 %s73, 1
      %p77 = scmp.eq.s32.totalorder %s18, 1
      %p78 = scmp.ne.s32.totalorder %s73, %s75
      %p79 = scmp.eq.s32.totalorder %s18, 0
      %p80 = por %p78, %p79
      %p81 = scmp.ne.s32.totalorder %s73, %s75
      %p82 = scmp.eq.s32.totalorder %s23, 1
      %p83 = por %p81, %p82
      %p84 = scmp.ne.s32.totalorder %s75, %s76
      %p85 = scmp.eq.s32.totalorder %s23, 0
      %p86 = por %p84, %p85
      %p87 = scmp.ne.s32.totalorder %s75, %s76
      %p88 = scmp.eq.s32.totalorder %s24, 1
      %p89 = por %p87, %p88
      %p91 = scmp.ne.s32.totalorder %s76, %s90
      %p92 = scmp.eq.s32.totalorder %s24, 0
      %p93 = por %p91, %p92
      %s95 = sadd.s32 %s94, 1
      %p98 = scmp.eq.s32.totalorder %s18, 1
      %p99 = scmp.ne.s32.totalorder %s94, %s96
      %p100 = scmp.eq.s32.totalorder %s18, 0
      %p101 = por %p99, %p100
      %p102 = scmp.ne.s32.totalorder %s94, %s96
      %p103 = scmp.eq.s32.totalorder %s23, 1
      %p104 = por %p102, %p103
      %p105 = scmp.ne.s32.totalorder %s96, %s97
      %p106 = scmp.eq.s32.totalorder %s23, 0
      %p107 = por %p105, %p106
      %p108 = scmp.ne.s32.totalorder %s96, %s97
      %p109 = scmp.eq.s32.totalorder %s24, 1
      %p110 = por %p108, %p109
      %p112 = scmp.ne.s32.totalorder %s97, %s111
      %p113 = scmp.eq.s32.totalorder %s24, 0
      %p114 = por %p112, %p113
      %s116 = sadd.s32 %s115, 1
      %p119 = scmp.eq.s32.totalorder %s18, 1
      %p120 = scmp.ne.s32.totalorder %s115, %s117
      %p121 = scmp.eq.s32.totalorder %s18, 0
      %p122 = por %p120, %p121
      %p123 = scmp.ne.s32.totalorder %s115, %s117
      %p124 = scmp.eq.s32.totalorder %s23, 1
      %p125 = por %p123, %p124
      %p126 = scmp.ne.s32.totalorder %s117, %s118
      %p127 = scmp.eq.s32.totalorder %s23, 0
      %p128 = por %p126, %p127
      %p129 = scmp.ne.s32.totalorder %s117, %s118
      %p130 = scmp.eq.s32.totalorder %s24, 1
      %p131 = por %p129, %p130
      %p133 = scmp.ne.s32.totalorder %s118, %s132
      %p134 = scmp.eq.s32.totalorder %s24, 0
      %p135 = por %p133, %p134
      %s137 = sadd.s32 %s136, 1
      %p140 = scmp.eq.s32.totalorder %s18, 1
      %p141 = scmp.ne.s32.totalorder %s136, %s138
      %p142 = scmp.eq.s32.totalorder %s18, 0
      %p143 = por %p141, %p142
      %p144 = scmp.ne.s32.totalorder %s136, %s138
      %p145 = scmp.eq.s32.totalorder %s23, 1
      %p146 = por %p144, %p145
      %p147 = scmp.ne.s32.totalorder %s138, %s139
      %p148 = scmp.eq.s32.totalorder %s23, 0
      %p149 = por %p147, %p148
      %p150 = scmp.ne.s32.totalorder %s138, %s139
      %p151 = scmp.eq.s32.totalorder %s24, 1
      %p152 = por %p150, %p151
      %p154 = scmp.ne.s32.totalorder %s139, %s153
      %p155 = scmp.eq.s32.totalorder %s24, 0
      %p156 = por %p154, %p155
      %s158 = sadd.s32 %s157, 1
      %p161 = scmp.eq.s32.totalorder %s18, 1
      %p162 = scmp.ne.s32.totalorder %s157, %s159
      %p163 = scmp.eq.s32.totalorder %s18, 0
      %p164 = por %p162, %p163
      %p165 = scmp.ne.s32.totalorder %s157, %s159
      %p166 = scmp.eq.s32.totalorder %s23, 1
      %p167 = por %p165, %p166
      %p168 = scmp.ne.s32.totalorder %s159, %s160
      %p169 = scmp.eq.s32.totalorder %s23, 0
      %p170 = por %p168, %p169
      %p171 = scmp.ne.s32.totalorder %s159, %s160
      %p172 = scmp.eq.s32.totalorder %s24, 1
      %p173 = por %p171, %p172
      %p175 = scmp.ne.s32.totalorder %s160, %s174
      %p176 = scmp.eq.s32.totalorder %s24, 0
      %p177 = por %p175, %p176
      %s178 = ssub.s32 %s18, %s25
      %p179 = scmp.eq.s32.totalorder %s178, 0
      %s181 = sadd.s32 %s180, 1
      %s182 = scalar_select %p179, %s180, %s181
      %p185 = pneg %p179
      %p186 = scmp.eq.s32.totalorder %s18, 1
      %p187 = por %p185, %p186
      %p188 = scmp.ne.s32.totalorder %s180, %s183
      %p189 = scmp.eq.s32.totalorder %s18, 0
      %p190 = por %p188, %p189
      %p191 = scmp.ne.s32.totalorder %s180, %s183
      %p192 = scmp.eq.s32.totalorder %s23, 1
      %p193 = por %p191, %p192
      %p194 = scmp.ne.s32.totalorder %s183, %s184
      %p195 = scmp.eq.s32.totalorder %s23, 0
      %p196 = por %p194, %p195
      %p197 = scmp.ne.s32.totalorder %s183, %s184
      %p198 = scmp.eq.s32.totalorder %s24, 1
      %p199 = por %p197, %p198
      %p201 = scmp.ne.s32.totalorder %s184, %s200
      %p202 = scmp.eq.s32.totalorder %s24, 0
      %p203 = por %p201, %p202
      %p204 = scmp.le.s32.totalorder 1, %s18
      %p205 = scmp.lt.s32.totalorder %s18, 3
      %p206 = pnand %p204, %p205
      %p207 = pneg %p206
      // Predicated region
      $region9: #{tpu_custom_call.1} parent=5 // pred_check
        _
      $region10: #{tpu_custom_call.1} parent=5 // pred_check_branch
        %209 = sbr.rel (%p206) target = $region12
      $region11: #{tpu_custom_call.1} parent=5 // pred_region
        %s210 = ssub.s32 %s18, 1
        // Predicated region
        $region13: #{tpu_custom_call.1} parent=11 // pred_check
          %p211 = pneg %p65
        $region14: #{tpu_custom_call.1} parent=11 // pred_check_branch
          %213 = sbr.rel (%p211) target = $region16
        $region15: #{tpu_custom_call.1} parent=11 // pred_region
          _
        $region16: #{tpu_custom_call.1} parent=11 // pred_fallthru
          _
        // Predicated region
        $region17: #{tpu_custom_call.1} parent=11 // pred_check
          %p214 = pneg %p86
        $region18: #{tpu_custom_call.1} parent=11 // pred_check_branch
          %216 = sbr.rel (%p214) target = $region20
        $region19: #{tpu_custom_call.1} parent=11 // pred_region
          _
        $region20: #{tpu_custom_call.1} parent=11 // pred_fallthru
          _
        // Predicated region
        $region21: #{tpu_custom_call.1} parent=11 // pred_check
          %p217 = pneg %p107
        $region22: #{tpu_custom_call.1} parent=11 // pred_check_branch
          %219 = sbr.rel (%p217) target = $region24
        $region23: #{tpu_custom_call.1} parent=11 // pred_region
          _
        $region24: #{tpu_custom_call.1} parent=11 // pred_fallthru
          _
        // Predicated region
        $region25: #{tpu_custom_call.1} parent=11 // pred_check
          %p220 = pneg %p128
        $region26: #{tpu_custom_call.1} parent=11 // pred_check_branch
          %222 = sbr.rel (%p220) target = $region28
        $region27: #{tpu_custom_call.1} parent=11 // pred_region
          _
        $region28: #{tpu_custom_call.1} parent=11 // pred_fallthru
          _
        // Predicated region
        $region29: #{tpu_custom_call.1} parent=11 // pred_check
          %p223 = pneg %p149
        $region30: #{tpu_custom_call.1} parent=11 // pred_check_branch
          %225 = sbr.rel (%p223) target = $region32
        $region31: #{tpu_custom_call.1} parent=11 // pred_region
          _
        $region32: #{tpu_custom_call.1} parent=11 // pred_fallthru
          _
        // Predicated region
        $region33: #{tpu_custom_call.1} parent=11 // pred_check
          %p226 = pneg %p170
        $region34: #{tpu_custom_call.1} parent=11 // pred_check_branch
          %228 = sbr.rel (%p226) target = $region36
        $region35: #{tpu_custom_call.1} parent=11 // pred_region
          _
        $region36: #{tpu_custom_call.1} parent=11 // pred_fallthru
          _
      $region12: #{tpu_custom_call.1} parent=5 // pred_fallthru
        _
      %p229 = scmp.lt.s32.totalorder %s18, 2
      // Predicated region
      $region37: #{tpu_custom_call.1} parent=5 // pred_check
        %p230 = pneg %p229
      $region38: #{tpu_custom_call.1} parent=5 // pred_check_branch
        %232 = sbr.rel (%p230) target = $region40
      $region39: #{tpu_custom_call.1} parent=5 // pred_region
        // Predicated region
        $region41: #{tpu_custom_call.1} parent=39 // pred_check
          %p233 = pneg %p38
        $region42: #{tpu_custom_call.1} parent=39 // pred_check_branch
          %235 = sbr.rel (%p233) target = $region44
        $region43: #{tpu_custom_call.1} parent=39 // pred_region
          %p236 = scmp.lt.s32.totalorder %s18, 1
          %s237 = scalar_select %p236, %s18, 1
          %s238 = smul.addr %s237, 8
          %s239 = scalar_lea.vmem %s0, %s238
        $region44: #{tpu_custom_call.1} parent=39 // pred_fallthru
          _
      $region40: #{tpu_custom_call.1} parent=5 // pred_fallthru
        _
      %p240 = scmp.le.s32.totalorder 1, %s18
      %p241 = scmp.lt.s32.totalorder %s18, 3
      %p242 = pnand %p240, %p241
      %p243 = pneg %p242
      // Predicated region
      $region45: #{tpu_custom_call.1} parent=5 // pred_check
        _
      $region46: #{tpu_custom_call.1} parent=5 // pred_check_branch
        %245 = sbr.rel (%p242) target = $region48
      $region47: #{tpu_custom_call.1} parent=5 // pred_region
        %s246 = ssub.s32 %s18, 1
        %p247 = scmp.lt.s32.totalorder %s23, 1
        %s248 = scalar_select %p247, %s23, 1
        %s249 = smul.addr %s248, 8
        %s250 = scalar_lea.vmem %s0, %s249
        %p251 = pneg %p44
        %p252 = pneg %p41
        %p253 = pneg %p65
        %p254 = pneg %p62
        %p255 = pneg %p86
        %p256 = pneg %p83
        %p257 = pneg %p107
        %p258 = pneg %p104
        %p259 = pneg %p128
        %p260 = pneg %p125
        %p261 = pneg %p149
        %p262 = pneg %p146
        %p263 = pneg %p170
        %p264 = pneg %p167
        %p265 = pneg %p196
        %p266 = pneg %p193
        %s267 = sand.u32 %s183, 1
        %s268 = scalar_lea.sflag [#allocation4], %s267
        %s269 = sand.u32 %s183, 1
        %s270 = scalar_lea.vmem [#allocation3], %s269
        %p271 = scmp.lt.s32.totalorder %s23, 1
        %s272 = scalar_select %p271, %s23, 1
        %s273 = smul.addr %s272, 8
        %s274 = scalar_lea.vmem %s0, %s273
        %v276 = vld [vmem:[%s274] sm:$0xff]
        %v277 = vpack.c.bf16 %v276, %v276
        %v278 = vld [vmem:[%s1] sm:$0xf]
        %v279 = vld [vmem:[%s1 + $0x4] sm:$0xf]
        %v282 = vunpack.c.l.b16 %v278
        %v283 = vunpack.c.l.b16 %v279
        %v284 = vpack.c.b16 %v283, %v282
        %vm286 = vcmask 130048
        %v288 = vsel %vm286, %v277, 0
        %290 = vmatprep.subr.bf16.mxu0 0
        %291 = vmatpush1.bf16.msra.mxu0 %v284
        %292 = vmatprep.subr.bf16.mxu0 0
        %293 = vmatpush1.bf16.msra.mxu0 0
        %294 = vmatprep.subr.bf16.mxu0 0
        %295 = vmatpush1.bf16.msra.mxu0 0
        %296 = vmatprep.subr.bf16.mxu0 0
        %297 = vmatpush1.bf16.msra.mxu0 0
        %298 = vmatprep.subr.bf16.mxu0 0
        %299 = vmatpush1.bf16.msra.mxu0 0
        %300 = vmatprep.subr.bf16.mxu0 0
        %301 = vmatpush1.bf16.msra.mxu0 0
        %302 = vmatprep.subr.bf16.mxu0 0
        %303 = vmatpush1.bf16.msra.mxu0 0
        %304 = vmatprep.subr.bf16.mxu0 0
        %305 = vmatpush1.bf16.msra.mxu0 0
        %306 = vmatprep.subr.bf16.mxu0 0
        %307 = vmatpush1.bf16.msra.mxu0 0
        %308 = vmatprep.subr.bf16.mxu0 0
        %309 = vmatpush1.bf16.msra.mxu0 0
        %310 = vmatprep.subr.bf16.mxu0 0
        %311 = vmatpush1.bf16.msra.mxu0 0
        %312 = vmatprep.subr.bf16.mxu0 0
        %313 = vmatpush1.bf16.msra.mxu0 0
        %314 = vmatprep.subr.bf16.mxu0 0
        %315 = vmatpush1.bf16.msra.mxu0 0
        %316 = vmatprep.subr.bf16.mxu0 0
        %317 = vmatpush1.bf16.msra.mxu0 0
        %318 = vmatprep.subr.bf16.mxu0 0
        %319 = vmatpush1.bf16.msra.mxu0 0
        %320 = vmatprep.subr.bf16.mxu0 0
        %321 = vmatpush1.bf16.msra.mxu0 0
        %322 = vmatprep.mubr.bf16.mxu0 0
        %323 = vmatmul.mubr.bf16.gmra.mrb[0].mxu0 %v288
        %v324 = vpop.f32.mrb[0].mxu0
        %v325 = vadd.f32 0.0, %v324
        %v326 = vpop.f32.mrb[0].mxu0
        %v327 = vpop.f32.mrb[0].mxu0
        %v328 = vpop.f32.mrb[0].mxu0
        %329 = vdwg.mxu0
        %v330 = vld [vmem:[%s2] sm:$0x1]
        %v332 = vlaneseq
        %v333 = vshrl.u32 %v332, 7
        %v334 = vsub.s32 0, %v333
        %v335 = vrot.slane %v330, %v334
        %336 = vrot.lane.b32.xlu0 %v335, 8
        %v337 = vpop.permute.xlu0 %336
        %v339 = vadd.f32 %v325, %v337
        %v340 = vand.u32 2147483647, %v325
        %vm341 = vcmp.le.f32.partialorder %v340, 0.7853982
        %vm342 = vcmp.lt.s32.totalorder %v325, 0
        %v343 = vand.u32 %v325, 2139095040
        %v344 = vshrl.u32 %v343, 23
        %v345 = vsub.s32 %v344, 127
        %v346 = vand.u32 2147483647, %v325
        %v347 = vand.u32 %v346, 8388607
        %v348 = vor.u32 %v347, 8388608
        %v349 = vsub.s32 0, %v348
        %v350 = vadd.s32 %v345, 1
        %vm351 = vcmp.gt.s32.totalorder %v350, 0
        %v352 = vsel %vm351, %v350, 0
        %v353 = vshrl.u32 %v352, 5
        %v354 = vand.u32 %v352, 31
        %v355 = vsub.s32 32, %v354
        %v356 = vshrl.u32 683565275, %v355
        %v357 = vshll.u32 683565275, %v354
        %v358 = vshrl.u32 2475754826, %v355
        %v359 = vor.u32 %v357, %v358
        %v360 = vshll.u32 2475754826, %v354
        %v361 = vshrl.u32 2131351028, %v355
        %v362 = vor.u32 %v360, %v361
        %v363 = vshll.u32 2131351028, %v354
        %v364 = vshrl.u32 2102212464, %v355
        %v365 = vor.u32 %v363, %v364
        %v366 = vshll.u32 2102212464, %v354
        %v367 = vshrl.u32 920167782, %v355
        %v368 = vor.u32 %v366, %v367
        %v369 = vshll.u32 920167782, %v354
        %v370 = vshrl.u32 1326507024, %v355
        %v371 = vor.u32 %v369, %v370
        %vm372 = vcmp.lt.s32.totalorder %v353, 1
        %vm373 = vcmp.lt.s32.totalorder %v353, 2
        %vm374 = vcmp.lt.s32.totalorder %v353, 3
        %vm375 = vcmp.lt.s32.totalorder %v353, 4
        %v376 = vsel %vm372, %v356, %v359
        %v377 = vsel %vm375, %v365, 2102212464
        %v378 = vsel %vm374, %v362, %v377
        %v379 = vsel %vm373, %v376, %v378
        %v380 = vsel %vm372, %v359, %v362
        %v381 = vsel %vm375, %v368, 920167782
        %v382 = vsel %vm374, %v365, %v381
        %v383 = vsel %vm373, %v380, %v382
        %v384 = vsel %vm372, %v362, %v365
        %v385 = vsel %vm375, %v371, 1326507024
        %v386 = vsel %vm374, %v368, %v385
        %v387 = vsel %vm373, %v384, %v386
        %v388 = vshll.u32 %v348, 8
        %v389 = vmul.u32.u64.compose %v388, %v387
        %v390 = vextract.low.u32 %v389
        %v391 = vextract.high.u32 %v389
        %v392 = vmul.u32.u64.compose %v388, %v383
        %v393 = vextract.low.u32 %v392
        %v394 = vextract.high.u32 %v392
        %v395 = vmul.u32 %v388, %v379
        %v396 = vadd.s32 %v391, %v393
        %vm397 = vc.u32 %v391, %v393
        %v398 = vadd.s32 %v394, 1
        %v399 = vsel %vm397, %v398, %v394
        %v400 = vadd.s32 %v395, %v399
        %v401 = vadd.s32 %v400, 536870912
        %v402 = vshrl.u32 %v401, 30
        %v403 = vshll.u32 %v402, 30
        %v404 = vsub.s32 %v400, %v403
        %vm405 = vcmp.lt.s32.totalorder %v404, 0
        %v406 = vsub.s32 0, %v404
        %v407 = vsel %vm405, %v406, %v404
        %v408 = vclz %v407
        %v409 = vsub.s32 %v408, 2
        %vm410 = vcmp.gt.s32.totalorder 0, %v409
        %v411 = vsel %vm410, 0, %v409
        %v412 = vsub.s32 32, %v411
        %v413 = vshll.u32 %v404, %v411
        %v414 = vshrl.u32 %v396, %v412
        %v415 = vor.u32 %v413, %v414
        %v416 = vsub.s32 4294967266, %v411
        %v417 = vadd.s32 %v416, 127
        %v418 = vshll.u32 %v417, 23
        %v419 = vor.u32 4788187, %v418
        %v420 = vand.u32 2147483647, %v419
        %v422 = vcvt.s32.f32 %v415
        %v423 = vmul.f32 %v422, %v420
        %v424 = vxor.u32 %v423, 2147483648
        %v425 = vsel %vm342, %v424, %v423
        %v426 = vsub.s32 4, %v402
        %v427 = vsel %vm342, %v426, %v402
        %v428 = vsel %vm341, %v325, %v425
        %v429 = vsel %vm341, 0, %v427
        %v430 = vcosq.f32.pop %v428
        %v431 = vsinq.f32.pop %v428
        %vm432 = vweird.f32 %v325
        %v433 = vand.u32 %v429, 3
        %vm434 = vcmp.lt.s32.totalorder %v433, 2
        %vm435 = vcmp.eq.s32.totalorder %v433, 0
        %v436 = vxor.u32 %v431, 2147483648
        %v437 = vsel %vm435, %v430, %v436
        %vm438 = vcmp.eq.s32.totalorder %v433, 2
        %v439 = vxor.u32 %v430, 2147483648
        %v440 = vsel %vm438, %v439, %v431
        %v441 = vsel %vm434, %v437, %v440
        %v442 = vsel %vm432, nan, %v441
        %v443 = vand.u32 2147483647, %v325
        %vm444 = vcmp.le.f32.partialorder %v443, 0.7853982
        %vm445 = vcmp.lt.s32.totalorder %v325, 0
        %v446 = vand.u32 %v325, 2139095040
        %v447 = vshrl.u32 %v446, 23
        %v448 = vsub.s32 %v447, 127
        %v449 = vand.u32 2147483647, %v325
        %v450 = vand.u32 %v449, 8388607
        %v451 = vor.u32 %v450, 8388608
        %v452 = vsub.s32 0, %v451
        %v453 = vadd.s32 %v448, 1
        %vm454 = vcmp.gt.s32.totalorder %v453, 0
        %v455 = vsel %vm454, %v453, 0
        %v456 = vshrl.u32 %v455, 5
        %v457 = vand.u32 %v455, 31
        %v458 = vsub.s32 32, %v457
        %v459 = vshrl.u32 683565275, %v458
        %v460 = vshll.u32 683565275, %v457
        %v461 = vshrl.u32 2475754826, %v458
        %v462 = vor.u32 %v460, %v461
        %v463 = vshll.u32 2475754826, %v457
        %v464 = vshrl.u32 2131351028, %v458
        %v465 = vor.u32 %v463, %v464
        %v466 = vshll.u32 2131351028, %v457
        %v467 = vshrl.u32 2102212464, %v458
        %v468 = vor.u32 %v466, %v467
        %v469 = vshll.u32 2102212464, %v457
        %v470 = vshrl.u32 920167782, %v458
        %v471 = vor.u32 %v469, %v470
        %v472 = vshll.u32 920167782, %v457
        %v473 = vshrl.u32 1326507024, %v458
        %v474 = vor.u32 %v472, %v473
        %vm475 = vcmp.lt.s32.totalorder %v456, 1
        %vm476 = vcmp.lt.s32.totalorder %v456, 2
        %vm477 = vcmp.lt.s32.totalorder %v456, 3
        %vm478 = vcmp.lt.s32.totalorder %v456, 4
        %v479 = vsel %vm475, %v459, %v462
        %v480 = vsel %vm478, %v468, 2102212464
        %v481 = vsel %vm477, %v465, %v480
        %v482 = vsel %vm476, %v479, %v481
        %v483 = vsel %vm475, %v462, %v465
        %v484 = vsel %vm478, %v471, 920167782
        %v485 = vsel %vm477, %v468, %v484
        %v486 = vsel %vm476, %v483, %v485
        %v487 = vsel %vm475, %v465, %v468
        %v488 = vsel %vm478, %v474, 1326507024
        %v489 = vsel %vm477, %v471, %v488
        %v490 = vsel %vm476, %v487, %v489
        %v491 = vshll.u32 %v451, 8
        %v492 = vmul.u32.u64.compose %v491, %v490
        %v493 = vextract.low.u32 %v492
        %v494 = vextract.high.u32 %v492
        %v495 = vmul.u32.u64.compose %v491, %v486
        %v496 = vextract.low.u32 %v495
        %v497 = vextract.high.u32 %v495
        %v498 = vmul.u32 %v491, %v482
        %v499 = vadd.s32 %v494, %v496
        %vm500 = vc.u32 %v494, %v496
        %v501 = vadd.s32 %v497, 1
        %v502 = vsel %vm500, %v501, %v497
        %v503 = vadd.s32 %v498, %v502
        %v504 = vadd.s32 %v503, 536870912
        %v505 = vshrl.u32 %v504, 30
        %v506 = vshll.u32 %v505, 30
        %v507 = vsub.s32 %v503, %v506
        %vm508 = vcmp.lt.s32.totalorder %v507, 0
        %v509 = vsub.s32 0, %v507
        %v510 = vsel %vm508, %v509, %v507
        %v511 = vclz %v510
        %v512 = vsub.s32 %v511, 2
        %vm513 = vcmp.gt.s32.totalorder 0, %v512
        %v514 = vsel %vm513, 0, %v512
        %v515 = vsub.s32 32, %v514
        %v516 = vshll.u32 %v507, %v514
        %v517 = vshrl.u32 %v499, %v515
        %v518 = vor.u32 %v516, %v517
        %v519 = vsub.s32 4294967266, %v514
        %v520 = vadd.s32 %v519, 127
        %v521 = vshll.u32 %v520, 23
        %v522 = vor.u32 4788187, %v521
        %v523 = vand.u32 2147483647, %v522
        %v525 = vcvt.s32.f32 %v518
        %v526 = vmul.f32 %v525, %v523
        %v527 = vxor.u32 %v526, 2147483648
        %v528 = vsel %vm445, %v527, %v526
        %v529 = vsub.s32 4, %v505
        %v530 = vsel %vm445, %v529, %v505
        %v531 = vsel %vm444, %v325, %v528
        %v532 = vsel %vm444, 0, %v530
        %v533 = vcosq.f32.pop %v531
        %v534 = vsinq.f32.pop %v531
        %vm535 = vweird.f32 %v325
        %v536 = vadd.s32 %v532, 3
        %v537 = vand.u32 %v536, 3
        %vm538 = vcmp.lt.s32.totalorder %v537, 2
        %vm539 = vcmp.eq.s32.totalorder %v537, 0
        %v540 = vxor.u32 %v534, 2147483648
        %v541 = vsel %vm539, %v533, %v540
        %vm542 = vcmp.eq.s32.totalorder %v537, 2
        %v543 = vxor.u32 %v533, 2147483648
        %v544 = vsel %vm542, %v543, %v534
        %v545 = vsel %vm538, %v541, %v544
        %v546 = vsel %vm535, nan, %v545
        %v547 = vmul.f32 %v339, 0.70710677
        %vm548 = vcmp.ge.f32.partialorder %v547, 0.0
        %v549 = vsel %vm548, 1.0, -1.0
        %v550 = vand.u32 2147483647, %v547
        %v551 = vmul.f32 %v550, 0.3275911
        %v552 = vadd.f32 %v551, 1.0
        %v553 = vrcp.pop %v552
        %v554 = vmul.f32 1.0, %v553
        %v555 = vmul.f32 %v554, 1.0614054
        %v556 = vadd.f32 %v555, -1.4531521
        %v557 = vmul.f32 %v554, %v556
        %v558 = vadd.f32 %v557, 1.4214138
        %v559 = vmul.f32 %v554, %v558
        %v560 = vadd.f32 %v559, -0.28449672
        %v561 = vmul.f32 %v554, %v560
        %v562 = vadd.f32 %v561, 0.2548296
        %v563 = vmul.f32 %v554, %v562
        %v564 = vmul.f32 %v550, %v550
        %v565 = vsub.f32 0.0, %v564
        %v566 = vmul.f32 %v565, 1.442695
        %v567 = vpow.pop %v566
        %v568 = vmul.f32 %v563, %v567
        %v569 = vsub.f32 1.0, %v568
        %v570 = vmul.f32 %v549, %v569
        %v571 = vmul.f32 %v339, 0.5
        %v572 = vadd.f32 %v570, 1.0
        %v573 = vmul.f32 %v571, %v572
        %575 = vrot.lane.b32.xlu0 %v546, 8
        %v576 = vpop.permute.xlu0 %575
        %579 = vrot.lane.b32.xlu0 %v573, 8
        %v580 = vpop.permute.xlu0 %579
        %vm582 = vcmask 64512
        %v583 = vsel %vm582, %v442, %v576
        %v584 = vsel %vm286, %v583, %v580
        %v585 = vpack.c.bf16 %v584, %v584
        %v586 = vld [vmem:[%s3] sm:$0xf]
        %v587 = vld [vmem:[%s3 + $0x4] sm:$0xf]
        %v588 = vld [vmem:[%s3 + $0x8] sm:$0xf]
        %v589 = vld [vmem:[%s3 + $0xc] sm:$0xf]
        %v590 = vld [vmem:[%s3 + $0x10] sm:$0xf]
        %v591 = vld [vmem:[%s3 + $0x14] sm:$0xf]
        %v598 = vunpack.c.l.b16 %v586
        %v599 = vunpack.c.l.b16 %v587
        %v600 = vunpack.c.l.b16 %v588
        %v601 = vunpack.c.l.b16 %v589
        %v602 = vunpack.c.l.b16 %v590
        %v603 = vunpack.c.l.b16 %v591
        %v604 = vpack.c.b16 %v599, %v598
        %v605 = vpack.c.b16 %v601, %v600
        %v606 = vpack.c.b16 %v603, %v602
        %vm610 = vcmask 392192
        %v612 = vsel %vm610, %v585, 0
        %614 = vmatprep.subr.bf16.mxu0 0
        %615 = vmatpush1.bf16.msra.mxu0 %v604
        %616 = vmatprep.subr.bf16.mxu0 0
        %617 = vmatpush1.bf16.msra.mxu0 %v605
        %618 = vmatprep.subr.bf16.mxu0 0
        %619 = vmatpush1.bf16.msra.mxu0 %v606
        %620 = vmatprep.subr.bf16.mxu0 0
        %621 = vmatpush1.bf16.msra.mxu0 0
        %622 = vmatprep.subr.bf16.mxu0 0
        %623 = vmatpush1.bf16.msra.mxu0 0
        %624 = vmatprep.subr.bf16.mxu0 0
        %625 = vmatpush1.bf16.msra.mxu0 0
        %626 = vmatprep.subr.bf16.mxu0 0
        %627 = vmatpush1.bf16.msra.mxu0 0
        %628 = vmatprep.subr.bf16.mxu0 0
        %629 = vmatpush1.bf16.msra.mxu0 0
        %630 = vmatprep.subr.bf16.mxu0 0
        %631 = vmatpush1.bf16.msra.mxu0 0
        %632 = vmatprep.subr.bf16.mxu0 0
        %633 = vmatpush1.bf16.msra.mxu0 0
        %634 = vmatprep.subr.bf16.mxu0 0
        %635 = vmatpush1.bf16.msra.mxu0 0
        %636 = vmatprep.subr.bf16.mxu0 0
        %637 = vmatpush1.bf16.msra.mxu0 0
        %638 = vmatprep.subr.bf16.mxu0 0
        %639 = vmatpush1.bf16.msra.mxu0 0
        %640 = vmatprep.subr.bf16.mxu0 0
        %641 = vmatpush1.bf16.msra.mxu0 0
        %642 = vmatprep.subr.bf16.mxu0 0
        %643 = vmatpush1.bf16.msra.mxu0 0
        %644 = vmatprep.subr.bf16.mxu0 0
        %645 = vmatpush1.bf16.msra.mxu0 0
        %646 = vmatprep.mubr.bf16.mxu0 0
        %647 = vmatmul.mubr.bf16.gmra.mrb[0].mxu0 %v612
        %v648 = vpop.f32.mrb[0].mxu0
        %v649 = vadd.f32 0.0, %v648
        %v650 = vpop.f32.mrb[0].mxu0
        %v651 = vpop.f32.mrb[0].mxu0
        %v652 = vpop.f32.mrb[0].mxu0
        %653 = vdwg.mxu0
        %v654 = vld [vmem:[%s4] sm:$0x1]
        %v656 = vlaneseq
        %v657 = vshrl.u32 %v656, 7
        %v658 = vsub.s32 0, %v657
        %v659 = vrot.slane %v654, %v658
        %660 = vrot.lane.b32.xlu0 %v659, 8
        %v661 = vpop.permute.xlu0 %660
        %v663 = vadd.f32 %v649, %v661
        %v664 = vand.u32 2147483647, %v649
        %vm665 = vcmp.le.f32.partialorder %v664, 0.7853982
        %vm666 = vcmp.lt.s32.totalorder %v649, 0
        %v667 = vand.u32 %v649, 2139095040
        %v668 = vshrl.u32 %v667, 23
        %v669 = vsub.s32 %v668, 127
        %v670 = vand.u32 2147483647, %v649
        %v671 = vand.u32 %v670, 8388607
        %v672 = vor.u32 %v671, 8388608
        %v673 = vsub.s32 0, %v672
        %v674 = vadd.s32 %v669, 1
        %vm675 = vcmp.gt.s32.totalorder %v674, 0
        %v676 = vsel %vm675, %v674, 0
        %v677 = vshrl.u32 %v676, 5
        %v678 = vand.u32 %v676, 31
        %v679 = vsub.s32 32, %v678
        %v680 = vshrl.u32 683565275, %v679
        %v681 = vshll.u32 683565275, %v678
        %v682 = vshrl.u32 2475754826, %v679
        %v683 = vor.u32 %v681, %v682
        %v684 = vshll.u32 2475754826, %v678
        %v685 = vshrl.u32 2131351028, %v679
        %v686 = vor.u32 %v684, %v685
        %v687 = vshll.u32 2131351028, %v678
        %v688 = vshrl.u32 2102212464, %v679
        %v689 = vor.u32 %v687, %v688
        %v690 = vshll.u32 2102212464, %v678
        %v691 = vshrl.u32 920167782, %v679
        %v692 = vor.u32 %v690, %v691
        %v693 = vshll.u32 920167782, %v678
        %v694 = vshrl.u32 1326507024, %v679
        %v695 = vor.u32 %v693, %v694
        %vm696 = vcmp.lt.s32.totalorder %v677, 1
        %vm697 = vcmp.lt.s32.totalorder %v677, 2
        %vm698 = vcmp.lt.s32.totalorder %v677, 3
        %vm699 = vcmp.lt.s32.totalorder %v677, 4
        %v700 = vsel %vm696, %v680, %v683
        %v701 = vsel %vm699, %v689, 2102212464
        %v702 = vsel %vm698, %v686, %v701
        %v703 = vsel %vm697, %v700, %v702
        %v704 = vsel %vm696, %v683, %v686
        %v705 = vsel %vm699, %v692, 920167782
        %v706 = vsel %vm698, %v689, %v705
        %v707 = vsel %vm697, %v704, %v706
        %v708 = vsel %vm696, %v686, %v689
        %v709 = vsel %vm699, %v695, 1326507024
        %v710 = vsel %vm698, %v692, %v709
        %v711 = vsel %vm697, %v708, %v710
        %v712 = vshll.u32 %v672, 8
        %v713 = vmul.u32.u64.compose %v712, %v711
        %v714 = vextract.low.u32 %v713
        %v715 = vextract.high.u32 %v713
        %v716 = vmul.u32.u64.compose %v712, %v707
        %v717 = vextract.low.u32 %v716
        %v718 = vextract.high.u32 %v716
        %v719 = vmul.u32 %v712, %v703
        %v720 = vadd.s32 %v715, %v717
        %vm721 = vc.u32 %v715, %v717
        %v722 = vadd.s32 %v718, 1
        %v723 = vsel %vm721, %v722, %v718
        %v724 = vadd.s32 %v719, %v723
        %v725 = vadd.s32 %v724, 536870912
        %v726 = vshrl.u32 %v725, 30
        %v727 = vshll.u32 %v726, 30
        %v728 = vsub.s32 %v724, %v727
        %vm729 = vcmp.lt.s32.totalorder %v728, 0
        %v730 = vsub.s32 0, %v728
        %v731 = vsel %vm729, %v730, %v728
        %v732 = vclz %v731
        %v733 = vsub.s32 %v732, 2
        %vm734 = vcmp.gt.s32.totalorder 0, %v733
        %v735 = vsel %vm734, 0, %v733
        %v736 = vsub.s32 32, %v735
        %v737 = vshll.u32 %v728, %v735
        %v738 = vshrl.u32 %v720, %v736
        %v739 = vor.u32 %v737, %v738
        %v740 = vsub.s32 4294967266, %v735
        %v741 = vadd.s32 %v740, 127
        %v742 = vshll.u32 %v741, 23
        %v743 = vor.u32 4788187, %v742
        %v744 = vand.u32 2147483647, %v743
        %v746 = vcvt.s32.f32 %v739
        %v747 = vmul.f32 %v746, %v744
        %v748 = vxor.u32 %v747, 2147483648
        %v749 = vsel %vm666, %v748, %v747
        %v750 = vsub.s32 4, %v726
        %v751 = vsel %vm666, %v750, %v726
        %v752 = vsel %vm665, %v649, %v749
        %v753 = vsel %vm665, 0, %v751
        %v754 = vcosq.f32.pop %v752
        %v755 = vsinq.f32.pop %v752
        %vm756 = vweird.f32 %v649
        %v757 = vand.u32 %v753, 3
        %vm758 = vcmp.lt.s32.totalorder %v757, 2
        %vm759 = vcmp.eq.s32.totalorder %v757, 0
        %v760 = vxor.u32 %v755, 2147483648
        %v761 = vsel %vm759, %v754, %v760
        %vm762 = vcmp.eq.s32.totalorder %v757, 2
        %v763 = vxor.u32 %v754, 2147483648
        %v764 = vsel %vm762, %v763, %v755
        %v765 = vsel %vm758, %v761, %v764
        %v766 = vsel %vm756, nan, %v765
        %v767 = vand.u32 2147483647, %v649
        %vm768 = vcmp.le.f32.partialorder %v767, 0.7853982
        %vm769 = vcmp.lt.s32.totalorder %v649, 0
        %v770 = vand.u32 %v649, 2139095040
        %v771 = vshrl.u32 %v770, 23
        %v772 = vsub.s32 %v771, 127
        %v773 = vand.u32 2147483647, %v649
        %v774 = vand.u32 %v773, 8388607
        %v775 = vor.u32 %v774, 8388608
        %v776 = vsub.s32 0, %v775
        %v777 = vadd.s32 %v772, 1
        %vm778 = vcmp.gt.s32.totalorder %v777, 0
        %v779 = vsel %vm778, %v777, 0
        %v780 = vshrl.u32 %v779, 5
        %v781 = vand.u32 %v779, 31
        %v782 = vsub.s32 32, %v781
        %v783 = vshrl.u32 683565275, %v782
        %v784 = vshll.u32 683565275, %v781
        %v785 = vshrl.u32 2475754826, %v782
        %v786 = vor.u32 %v784, %v785
        %v787 = vshll.u32 2475754826, %v781
        %v788 = vshrl.u32 2131351028, %v782
        %v789 = vor.u32 %v787, %v788
        %v790 = vshll.u32 2131351028, %v781
        %v791 = vshrl.u32 2102212464, %v782
        %v792 = vor.u32 %v790, %v791
        %v793 = vshll.u32 2102212464, %v781
        %v794 = vshrl.u32 920167782, %v782
        %v795 = vor.u32 %v793, %v794
        %v796 = vshll.u32 920167782, %v781
        %v797 = vshrl.u32 1326507024, %v782
        %v798 = vor.u32 %v796, %v797
        %vm799 = vcmp.lt.s32.totalorder %v780, 1
        %vm800 = vcmp.lt.s32.totalorder %v780, 2
        %vm801 = vcmp.lt.s32.totalorder %v780, 3
        %vm802 = vcmp.lt.s32.totalorder %v780, 4
        %v803 = vsel %vm799, %v783, %v786
        %v804 = vsel %vm802, %v792, 2102212464
        %v805 = vsel %vm801, %v789, %v804
        %v806 = vsel %vm800, %v803, %v805
        %v807 = vsel %vm799, %v786, %v789
        %v808 = vsel %vm802, %v795, 920167782
        %v809 = vsel %vm801, %v792, %v808
        %v810 = vsel %vm800, %v807, %v809
        %v811 = vsel %vm799, %v789, %v792
        %v812 = vsel %vm802, %v798, 1326507024
        %v813 = vsel %vm801, %v795, %v812
        %v814 = vsel %vm800, %v811, %v813
        %v815 = vshll.u32 %v775, 8
        %v816 = vmul.u32.u64.compose %v815, %v814
        %v817 = vextract.low.u32 %v816
        %v818 = vextract.high.u32 %v816
        %v819 = vmul.u32.u64.compose %v815, %v810
        %v820 = vextract.low.u32 %v819
        %v821 = vextract.high.u32 %v819
        %v822 = vmul.u32 %v815, %v806
        %v823 = vadd.s32 %v818, %v820
        %vm824 = vc.u32 %v818, %v820
        %v825 = vadd.s32 %v821, 1
        %v826 = vsel %vm824, %v825, %v821
        %v827 = vadd.s32 %v822, %v826
        %v828 = vadd.s32 %v827, 536870912
        %v829 = vshrl.u32 %v828, 30
        %v830 = vshll.u32 %v829, 30
        %v831 = vsub.s32 %v827, %v830
        %vm832 = vcmp.lt.s32.totalorder %v831, 0
        %v833 = vsub.s32 0, %v831
        %v834 = vsel %vm832, %v833, %v831
        %v835 = vclz %v834
        %v836 = vsub.s32 %v835, 2
        %vm837 = vcmp.gt.s32.totalorder 0, %v836
        %v838 = vsel %vm837, 0, %v836
        %v839 = vsub.s32 32, %v838
        %v840 = vshll.u32 %v831, %v838
        %v841 = vshrl.u32 %v823, %v839
        %v842 = vor.u32 %v840, %v841
        %v843 = vsub.s32 4294967266, %v838
        %v844 = vadd.s32 %v843, 127
        %v845 = vshll.u32 %v844, 23
        %v846 = vor.u32 4788187, %v845
        %v847 = vand.u32 2147483647, %v846
        %v849 = vcvt.s32.f32 %v842
        %v850 = vmul.f32 %v849, %v847
        %v851 = vxor.u32 %v850, 2147483648
        %v852 = vsel %vm769, %v851, %v850
        %v853 = vsub.s32 4, %v829
        %v854 = vsel %vm769, %v853, %v829
        %v855 = vsel %vm768, %v649, %v852
        %v856 = vsel %vm768, 0, %v854
        %v857 = vcosq.f32.pop %v855
        %v858 = vsinq.f32.pop %v855
        %vm859 = vweird.f32 %v649
        %v860 = vadd.s32 %v856, 3
        %v861 = vand.u32 %v860, 3
        %vm862 = vcmp.lt.s32.totalorder %v861, 2
        %vm863 = vcmp.eq.s32.totalorder %v861, 0
        %v864 = vxor.u32 %v858, 2147483648
        %v865 = vsel %vm863, %v857, %v864
        %vm866 = vcmp.eq.s32.totalorder %v861, 2
        %v867 = vxor.u32 %v857, 2147483648
        %v868 = vsel %vm866, %v867, %v858
        %v869 = vsel %vm862, %v865, %v868
        %v870 = vsel %vm859, nan, %v869
        %v871 = vmul.f32 %v663, 0.70710677
        %vm872 = vcmp.ge.f32.partialorder %v871, 0.0
        %v873 = vsel %vm872, 1.0, -1.0
        %v874 = vand.u32 2147483647, %v871
        %v875 = vmul.f32 %v874, 0.3275911
        %v876 = vadd.f32 %v875, 1.0
        %v877 = vrcp.pop %v876
        %v878 = vmul.f32 1.0, %v877
        %v879 = vmul.f32 %v878, 1.0614054
        %v880 = vadd.f32 %v879, -1.4531521
        %v881 = vmul.f32 %v878, %v880
        %v882 = vadd.f32 %v881, 1.4214138
        %v883 = vmul.f32 %v878, %v882
        %v884 = vadd.f32 %v883, -0.28449672
        %v885 = vmul.f32 %v878, %v884
        %v886 = vadd.f32 %v885, 0.2548296
        %v887 = vmul.f32 %v878, %v886
        %v888 = vmul.f32 %v874, %v874
        %v889 = vsub.f32 0.0, %v888
        %v890 = vmul.f32 %v889, 1.442695
        %v891 = vpow.pop %v890
        %v892 = vmul.f32 %v887, %v891
        %v893 = vsub.f32 1.0, %v892
        %v894 = vmul.f32 %v873, %v893
        %v895 = vmul.f32 %v663, 0.5
        %v896 = vadd.f32 %v894, 1.0
        %v897 = vmul.f32 %v895, %v896
        %899 = vrot.lane.b32.xlu0 %v870, 8
        %v900 = vpop.permute.xlu0 %899
        %903 = vrot.lane.b32.xlu0 %v897, 8
        %v904 = vpop.permute.xlu0 %903
        %v906 = vsel %vm582, %v766, %v900
        %v907 = vsel %vm286, %v906, %v904
        %v908 = vld [vmem:[%s5] sm:$0x1]
        %v910 = vlaneseq
        %v911 = vshrl.u32 %v910, 7
        %v912 = vsub.s32 0, %v911
        %v913 = vrot.slane %v908, %v912
        %v915 = vmul.f32 %v907, %v913
        %v916 = vsel %vm610, %v915, 0.0
        %917 = vadd.xlane.f32.xlu0 %v916
        %v918 = vpop.xlane.xlu0 %917
        %v919 = vld [vmem:[#allocation2] sm:$0x1]
        %v921 = vlaneseq
        %v922 = vshrl.u32 %v921, 7
        %v923 = vsub.s32 0, %v922
        %v924 = vrot.slane %v919, %v923
        %v926 = vadd.f32 %v918, %v924
        %928 = vset.pattern.permute.xlu0 0
        %929 = vperm.xlu0 %928, %v926
        %v930 = vpop.permute.xlu0 %929
        %v931 = vlaneseq
        %v932 = vand.u32 %v931, 127
        %v933 = vlaneseq
        %v934 = vshrl.u32 %v933, 7
        %v935 = vsub.s32 %v932, %v934
        %v936 = vrot.slane %v930, %v935
        %vm938 = vcmask 57344
        %939 = vst.msk [vmem:[%s270] sm:$0x1] %vm938, %v936
        %s940 = sand.u32 %s183, 1
        %s941 = scalar_lea.sflag [#allocation4], %s940
        %s942 = sand.u32 %s183, 1
        %s943 = scalar_lea.vmem [#allocation3], %s942
        // Predicated region
        $region49: #{tpu_custom_call.1} parent=47 // pred_check
          %p944 = pneg %p193
        $region50: #{tpu_custom_call.1} parent=47 // pred_check_branch
          %946 = sbr.rel (%p944) target = $region52
        $region51: #{tpu_custom_call.1} parent=47 // pred_region
          %s948 = ssub.s32 16, 16
          %949 = vsyncadd %s941, %s948
          %s950 = smul.addr %s23, 16
          %s951 = scalar_lea.hbm %s7, %s950
          %s953 = sshll.u32 %s943, 4
          %s954 = int_to_ptr.vmem [resolvable:$true] %s953
          %956 = dma.vmem_to_hbm [thread:$0]  %s954, 16, %s951, %s941
        $region52: #{tpu_custom_call.1} parent=47 // pred_fallthru
          _
      $region48: #{tpu_custom_call.1} parent=5 // pred_fallthru
        _
      %p957 = scmp.le.s32.totalorder 2, %s18
      // Predicated region
      $region53: #{tpu_custom_call.1} parent=5 // pred_check
        %p958 = pneg %p957
      $region54: #{tpu_custom_call.1} parent=5 // pred_check_branch
        %960 = sbr.rel (%p958) target = $region56
      $region55: #{tpu_custom_call.1} parent=5 // pred_region
        %s961 = ssub.s32 %s18, 2
        // Predicated region
        $region57: #{tpu_custom_call.1} parent=55 // pred_check
          %p962 = pneg %p199
        $region58: #{tpu_custom_call.1} parent=55 // pred_check_branch
          %964 = sbr.rel (%p962) target = $region60
        $region59: #{tpu_custom_call.1} parent=55 // pred_region
          %s965 = sand.u32 %s184, 1
          %s966 = scalar_lea.sflag [#allocation4], %s965
          %s967 = sand.u32 %s184, 1
          %s968 = scalar_lea.vmem [#allocation3], %s967
          %969 = dma.done %s966, 16
        $region60: #{tpu_custom_call.1} parent=55 // pred_fallthru
          _
      $region56: #{tpu_custom_call.1} parent=5 // pred_fallthru
        _
    $region6: #{tpu_custom_call.1} parent=1 // loop_footer
      %s22 = sadd.s32 1, %s18
    $region7: #{tpu_custom_call.1} parent=1 // loop_footer_branch
      %17 = sbr.rel target = $region3
    $region8: #{tpu_custom_call.1} parent=1 // loop_exit
      _
    %970 = vsyncpa [#allocation4], 1
    %s971 = scalar_lea.sflag [#allocation4], 1
    %972 = vsyncpa %s971, 1

</llo_original>
